<compile_context>
chip_gen: v7x
topology: tpu7x:2x2x1
jax: 0.10.0
libtpu: 0.0.40
codegen_flags: <defaults>
</compile_context>

<pallas_src>
import numpy as np
import jax
import jax.numpy as jnp
from jax import lax
from jax.experimental import pallas as pl
from jax.experimental.pallas import tpu as pltpu

BN_EPS = 1e-5


# ----------------------------- Pallas kernel --------------------------------

def make_residual_block_kernel(*, k, dilation, pad, t, c_out, upsample):
    def conv_same(pad_ref, src, w_ref, bias):
        """'Same' 1-D conv along time: padded VMEM scratch + K tap matmuls.

        pad_ref : (Csrc, T + 2*pad) f32 VMEM scratch
        src     : (Csrc, T) f32 activation (time on lanes)
        w_ref   : (K, Cout, Csrc) f32 weights, BN scale already folded in
        bias    : (Cout, 1) folded BatchNorm bias
        """
        if pad > 0:
            pad_ref[...] = jnp.zeros_like(pad_ref)       # zero pad strips
            pad_ref[:, pad:pad + t] = src                # one write of the body
        else:
            pad_ref[...] = src
        xp = pad_ref[...]                                # (Csrc, T + 2*pad)

        acc = jnp.zeros((c_out, t), jnp.float32)
        for i in range(k):                               # K accumulated matmuls
            tap = xp[:, i * dilation:i * dilation + t]   # (Csrc, T) shifted view
            acc = acc + jnp.dot(w_ref[i], tap,
                                preferred_element_type=jnp.float32)
        return acc + bias                                # bias-only epilogue

    def kernel(x_ref, w1_ref, b1_ref, w2_ref, b2_ref, *rest):
        if upsample:
            w3_ref, b3_ref, out_ref, p1_ref, p2_ref = rest
        else:
            out_ref, p1_ref, p2_ref = rest

        x = x_ref[...]                                   # (Cin, T) f32

        # conv1 -> bn1 (scale folded into weights) -> relu1
        a = jnp.maximum(conv_same(p1_ref, x, w1_ref, b1_ref[...]), 0.0)

        # skip branch: 1x1 conv -> bn3 -> relu3, or identity
        if upsample:
            b = jnp.maximum(
                jnp.dot(w3_ref[...], x, preferred_element_type=jnp.float32)
                + b3_ref[...], 0.0)
        else:
            b = x

        # conv2 -> bn2 with residual add + final ReLU fused into the epilogue
        a = conv_same(p2_ref, a, w2_ref, b2_ref[...])
        out_ref[...] = jnp.maximum(a + b, 0.0).astype(out_ref.dtype)

    return kernel


def residual_block_pallas(x_nct, params, *, k, dilation, upsample, c_out):
    """x_nct: (B, Cin, T) f32 (NCHW with the trailing W=1 squeezed)."""
    B, c_in, T = x_nct.shape
    pad = ((k - 1) * dilation) // 2
    # TODO(synk): (k-1)*dilation odd would need asymmetric padding to match
    # PyTorch; the TCResNet configs used here are symmetric.

    kernel = make_residual_block_kernel(k=k, dilation=dilation, pad=pad, t=T,
                                        c_out=c_out, upsample=upsample)

    in_specs = [pl.BlockSpec((None, c_in, T), lambda b: (b, 0, 0))]
    for p in params:  # weights / biases: whole array, resident across steps
        in_specs.append(pl.BlockSpec(p.shape, lambda b, nd=p.ndim: (0,) * nd))

    out = pl.pallas_call(
        kernel,
        out_shape=jax.ShapeDtypeStruct((B, c_out, T), jnp.float32),
        grid=(B,),
        in_specs=in_specs,
        out_specs=pl.BlockSpec((None, c_out, T), lambda b: (b, 0, 0)),
        scratch_shapes=[pltpu.VMEM((c_in, T + 2 * pad), jnp.float32),
                        pltpu.VMEM((c_out, T + 2 * pad), jnp.float32)],
        compiler_params=pltpu.CompilerParams(
            dimension_semantics=("parallel",)),
    )(x_nct, *params)
    return out


# ------------------------- parameter construction ---------------------------

def _init_conv(key, cout, cin, kh, kw):
    fan_in = cin * kh * kw
    return jax.random.normal(key, (cout, cin, kh, kw), jnp.float32) / np.sqrt(fan_in)


def _init_bn(key, c):
    k1, k2, k3, k4 = jax.random.split(key, 4)
    gamma = 1.0 + 0.1 * jax.random.normal(k1, (c,), jnp.float32)
    beta = 0.1 * jax.random.normal(k2, (c,), jnp.float32)
    mean = 0.1 * jax.random.normal(k3, (c,), jnp.float32)
    var = jnp.abs(jax.random.normal(k4, (c,), jnp.float32)) + 0.5
    return (gamma, beta, mean, var)


def _fold_bn(bn):
    gamma, beta, mean, var = bn
    scale = gamma / jnp.sqrt(var + BN_EPS)
    bias = beta - mean * scale
    return scale, bias


def _w_tap_major(w, scale):
    # PyTorch (Cout, Cin, K, 1) -> (K, Cout, Cin), BN scale folded per out-chan
    wt = jnp.transpose(w[:, :, :, 0], (2, 0, 1))
    return wt * scale[None, :, None]


def build_residual_block(key, c_in, c_out, k, dilation):
    upsample = (c_in != c_out)
    keys = jax.random.split(key, 6)
    w1 = _init_conv(keys[0], c_out, c_in, k, 1)
    bn1 = _init_bn(keys[1], c_out)
    w2 = _init_conv(keys[2], c_out, c_out, k, 1)
    bn2 = _init_bn(keys[3], c_out)
    torch_params = {"w1": w1, "bn1": bn1, "w2": w2, "bn2": bn2}
    s1, b1 = _fold_bn(bn1)
    s2, b2 = _fold_bn(bn2)
    flat = [_w_tap_major(w1, s1), b1.reshape(-1, 1),
            _w_tap_major(w2, s2), b2.reshape(-1, 1)]
    if upsample:
        w3 = _init_conv(keys[4], c_out, c_in, 1, 1)
        bn3 = _init_bn(keys[5], c_out)
        torch_params["w3"] = w3
        torch_params["bn3"] = bn3
        s3, b3 = _fold_bn(bn3)
        w3f = w3[:, :, 0, 0] * s3[:, None]               # (Cout, Cin)
        flat += [w3f, b3.reshape(-1, 1)]
    return flat, torch_params, upsample


# -------------------------- plain-JAX reference -----------------------------

def _ref_conv(x, w, pad_h, dil):
    return lax.conv_general_dilated(
        x, w, window_strides=(1, 1),
        padding=[(pad_h, pad_h), (0, 0)],
        rhs_dilation=(dil, 1),
        dimension_numbers=("NCHW", "OIHW", "NCHW"),
        precision=lax.Precision.HIGHEST)


def _ref_bn(x, bn):
    gamma, beta, mean, var = bn
    s = gamma / jnp.sqrt(var + BN_EPS)
    return x * s.reshape(1, -1, 1, 1) + (beta - mean * s).reshape(1, -1, 1, 1)


def ref_residual_block(x_nchw, p, upsample, k, dilation):
    pad = ((k - 1) * dilation) // 2
    a = jnp.maximum(_ref_bn(_ref_conv(x_nchw, p["w1"], pad, dilation), p["bn1"]), 0.0)
    a = _ref_bn(_ref_conv(a, p["w2"], pad, dilation), p["bn2"])
    if upsample:
        b = jnp.maximum(_ref_bn(_ref_conv(x_nchw, p["w3"], 0, 1), p["bn3"]), 0.0)
    else:
        b = x_nchw
    return jnp.maximum(a + b, 0.0)


# ---------------------------------- main -------------------------------------

if __name__ == "__main__":
    key = jax.random.PRNGKey(0)
    B, T = 2, 128               # T = 128 -> lane-dense stores
    k, dilation = 9, 2          # TCResNet residual-block kernel (9, 1)

    configs = [
        ("upsample", 8, 16),    # in_channels != out_channels -> conv3 branch
        ("identity", 16, 16),   # in_channels == out_channels -> skip = x
    ]
    for name, c_in, c_out in configs:
        kx, kp, key = jax.random.split(key, 3)
        # Post-TC TCResNet layout: NCHW = (B, C, T, 1)
        x_nchw = jax.random.normal(kx, (B, c_in, T, 1), jnp.float32)
        flat, torch_p, upsample = build_residual_block(kp, c_in, c_out, k, dilation)

        x_nct = x_nchw[:, :, :, 0]                        # (B, C, T)
        y = residual_block_pallas(x_nct, flat, k=k, dilation=dilation,
                                  upsample=upsample, c_out=c_out)
        y = jax.block_until_ready(y)

        y_ref = ref_residual_block(x_nchw, torch_p, upsample, k, dilation)[:, :, :, 0]
        assert y.shape == (B, c_out, T)
        np.testing.assert_allclose(np.asarray(y), np.asarray(y_ref),
                                   rtol=5e-4, atol=5e-4)

    print("KERNEL_OK")
</pallas_src>

<mosaic_0001>
module attributes {stable_mosaic.version = 11 : i64} {
  func.func @kernel(%arg0: i32, %arg1: memref<1x8x128xf32, #tpu.memory_space<vmem>>, %arg2: memref<9x16x8xf32, #tpu.memory_space<vmem>>, %arg3: memref<16x1xf32, #tpu.memory_space<vmem>>, %arg4: memref<9x16x16xf32, #tpu.memory_space<vmem>>, %arg5: memref<16x1xf32, #tpu.memory_space<vmem>>, %arg6: memref<16x8xf32, #tpu.memory_space<vmem>>, %arg7: memref<16x1xf32, #tpu.memory_space<vmem>>, %arg8: memref<1x16x128xf32, #tpu.memory_space<vmem>>, %arg9: memref<8x144xf32, #tpu.memory_space<vmem>>, %arg10: memref<16x144xf32, #tpu.memory_space<vmem>>) attributes {dimension_semantics = [#tpu.dimension_semantics<parallel>], iteration_bounds = array<i64: 2>, scalar_prefetch = 0 : i64, scratch_operands = 2 : i64, tpu.core_type = #tpu.core_type<tc>, window_params = [{transform_indices = @transform_0, window_bounds = array<i64: 1, 8, 128>}, {pipeline_mode = #tpu.pipeline_mode<synchronous>, transform_indices = @transform_1, window_bounds = array<i64: 9, 16, 8>}, {pipeline_mode = #tpu.pipeline_mode<synchronous>, transform_indices = @transform_2, window_bounds = array<i64: 16, 1>}, {pipeline_mode = #tpu.pipeline_mode<synchronous>, transform_indices = @transform_3, window_bounds = array<i64: 9, 16, 16>}, {pipeline_mode = #tpu.pipeline_mode<synchronous>, transform_indices = @transform_4, window_bounds = array<i64: 16, 1>}, {pipeline_mode = #tpu.pipeline_mode<synchronous>, transform_indices = @transform_5, window_bounds = array<i64: 16, 8>}, {pipeline_mode = #tpu.pipeline_mode<synchronous>, transform_indices = @transform_6, window_bounds = array<i64: 16, 1>}, {transform_indices = @transform_7, window_bounds = array<i64: 1, 16, 128>}]} {
    %c0 = arith.constant 0 : index
    %c0_0 = arith.constant 0 : index
    %c0_1 = arith.constant 0 : index
    %0 = vector.load %arg1[%c0, %c0_0, %c0_1] : memref<1x8x128xf32, #tpu.memory_space<vmem>>, vector<1x8x128xf32>
    %1 = vector.shape_cast %0 : vector<1x8x128xf32> to vector<8x128xf32>
    %c0_2 = arith.constant 0 : index
    %c0_3 = arith.constant 0 : index
    %2 = vector.load %arg3[%c0_2, %c0_3] : memref<16x1xf32, #tpu.memory_space<vmem>>, vector<16x1xf32>
    %cst = arith.constant 0.000000e+00 : f32
    %3 = vector.broadcast %cst : f32 to vector<8x144xf32>
    %c0_4 = arith.constant 0 : index
    %c0_5 = arith.constant 0 : index
    %4 = vector.load %arg9[%c0_4, %c0_5] : memref<8x144xf32, #tpu.memory_space<vmem>>, vector<8x144xf32>
    tpu.vector_store %arg9[%c0_4, %c0_5], %3 {strides = array<i32>} : memref<8x144xf32, #tpu.memory_space<vmem>>, vector<8x144xf32>,
    %c0_6 = arith.constant 0 : index
    %c8 = arith.constant 8 : index
    %5 = vector.load %arg9[%c0_6, %c8] : memref<8x144xf32, #tpu.memory_space<vmem>>, vector<8x128xf32>
    tpu.vector_store %arg9[%c0_6, %c8], %1 {strides = array<i32>} : memref<8x144xf32, #tpu.memory_space<vmem>>, vector<8x128xf32>,
    %c0_7 = arith.constant 0 : index
    %c0_8 = arith.constant 0 : index
    %6 = vector.load %arg9[%c0_7, %c0_8] : memref<8x144xf32, #tpu.memory_space<vmem>>, vector<8x144xf32>
    %cst_9 = arith.constant 0.000000e+00 : f32
    %7 = vector.broadcast %cst_9 : f32 to vector<16x128xf32>
    %8 = vector.extract_strided_slice %6 {offsets = [0, 0], sizes = [8, 128], strides = [1, 1]} : vector<8x144xf32> to vector<8x128xf32>
    %c0_10 = arith.constant 0 : index
    %c0_11 = arith.constant 0 : index
    %c0_12 = arith.constant 0 : index
    %9 = vector.load %arg2[%c0_10, %c0_11, %c0_12] : memref<9x16x8xf32, #tpu.memory_space<vmem>>, vector<1x16x8xf32>
    %10 = vector.shape_cast %9 : vector<1x16x8xf32> to vector<16x8xf32>
    %cst_13 = arith.constant dense<0.000000e+00> : vector<16x128xf32>
    %11 = tpu.matmul %10, %8, %cst_13 {dimension_numbers = #tpu.dot_dimension_numbers<[1], [0], [0], [1], [0, 0, 1, 1], [], []>} : vector<16x8xf32>, vector<8x128xf32>, vector<16x128xf32> -> vector<16x128xf32>
    %12 = arith.addf %7, %11 : vector<16x128xf32>
    %13 = vector.extract_strided_slice %6 {offsets = [0, 2], sizes = [8, 128], strides = [1, 1]} : vector<8x144xf32> to vector<8x128xf32>
    %c1 = arith.constant 1 : index
    %c0_14 = arith.constant 0 : index
    %c0_15 = arith.constant 0 : index
    %14 = vector.load %arg2[%c1, %c0_14, %c0_15] : memref<9x16x8xf32, #tpu.memory_space<vmem>>, vector<1x16x8xf32>
    %15 = vector.shape_cast %14 : vector<1x16x8xf32> to vector<16x8xf32>
    %cst_16 = arith.constant dense<0.000000e+00> : vector<16x128xf32>
    %16 = tpu.matmul %15, %13, %cst_16 {dimension_numbers = #tpu.dot_dimension_numbers<[1], [0], [0], [1], [0, 0, 1, 1], [], []>} : vector<16x8xf32>, vector<8x128xf32>, vector<16x128xf32> -> vector<16x128xf32>
    %17 = arith.addf %12, %16 : vector<16x128xf32>
    %18 = vector.extract_strided_slice %6 {offsets = [0, 4], sizes = [8, 128], strides = [1, 1]} : vector<8x144xf32> to vector<8x128xf32>
    %c2 = arith.constant 2 : index
    %c0_17 = arith.constant 0 : index
    %c0_18 = arith.constant 0 : index
    %19 = vector.load %arg2[%c2, %c0_17, %c0_18] : memref<9x16x8xf32, #tpu.memory_space<vmem>>, vector<1x16x8xf32>
    %20 = vector.shape_cast %19 : vector<1x16x8xf32> to vector<16x8xf32>
    %cst_19 = arith.constant dense<0.000000e+00> : vector<16x128xf32>
    %21 = tpu.matmul %20, %18, %cst_19 {dimension_numbers = #tpu.dot_dimension_numbers<[1], [0], [0], [1], [0, 0, 1, 1], [], []>} : vector<16x8xf32>, vector<8x128xf32>, vector<16x128xf32> -> vector<16x128xf32>
    %22 = arith.addf %17, %21 : vector<16x128xf32>
    %23 = vector.extract_strided_slice %6 {offsets = [0, 6], sizes = [8, 128], strides = [1, 1]} : vector<8x144xf32> to vector<8x128xf32>
    %c3 = arith.constant 3 : index
    %c0_20 = arith.constant 0 : index
    %c0_21 = arith.constant 0 : index
    %24 = vector.load %arg2[%c3, %c0_20, %c0_21] : memref<9x16x8xf32, #tpu.memory_space<vmem>>, vector<1x16x8xf32>
    %25 = vector.shape_cast %24 : vector<1x16x8xf32> to vector<16x8xf32>
    %cst_22 = arith.constant dense<0.000000e+00> : vector<16x128xf32>
    %26 = tpu.matmul %25, %23, %cst_22 {dimension_numbers = #tpu.dot_dimension_numbers<[1], [0], [0], [1], [0, 0, 1, 1], [], []>} : vector<16x8xf32>, vector<8x128xf32>, vector<16x128xf32> -> vector<16x128xf32>
    %27 = arith.addf %22, %26 : vector<16x128xf32>
    %28 = vector.extract_strided_slice %6 {offsets = [0, 8], sizes = [8, 128], strides = [1, 1]} : vector<8x144xf32> to vector<8x128xf32>
    %c4 = arith.constant 4 : index
    %c0_23 = arith.constant 0 : index
    %c0_24 = arith.constant 0 : index
    %29 = vector.load %arg2[%c4, %c0_23, %c0_24] : memref<9x16x8xf32, #tpu.memory_space<vmem>>, vector<1x16x8xf32>
    %30 = vector.shape_cast %29 : vector<1x16x8xf32> to vector<16x8xf32>
    %cst_25 = arith.constant dense<0.000000e+00> : vector<16x128xf32>
    %31 = tpu.matmul %30, %28, %cst_25 {dimension_numbers = #tpu.dot_dimension_numbers<[1], [0], [0], [1], [0, 0, 1, 1], [], []>} : vector<16x8xf32>, vector<8x128xf32>, vector<16x128xf32> -> vector<16x128xf32>
    %32 = arith.addf %27, %31 : vector<16x128xf32>
    %33 = vector.extract_strided_slice %6 {offsets = [0, 10], sizes = [8, 128], strides = [1, 1]} : vector<8x144xf32> to vector<8x128xf32>
    %c5 = arith.constant 5 : index
    %c0_26 = arith.constant 0 : index
    %c0_27 = arith.constant 0 : index
    %34 = vector.load %arg2[%c5, %c0_26, %c0_27] : memref<9x16x8xf32, #tpu.memory_space<vmem>>, vector<1x16x8xf32>
    %35 = vector.shape_cast %34 : vector<1x16x8xf32> to vector<16x8xf32>
    %cst_28 = arith.constant dense<0.000000e+00> : vector<16x128xf32>
    %36 = tpu.matmul %35, %33, %cst_28 {dimension_numbers = #tpu.dot_dimension_numbers<[1], [0], [0], [1], [0, 0, 1, 1], [], []>} : vector<16x8xf32>, vector<8x128xf32>, vector<16x128xf32> -> vector<16x128xf32>
    %37 = arith.addf %32, %36 : vector<16x128xf32>
    %38 = vector.extract_strided_slice %6 {offsets = [0, 12], sizes = [8, 128], strides = [1, 1]} : vector<8x144xf32> to vector<8x128xf32>
    %c6 = arith.constant 6 : index
    %c0_29 = arith.constant 0 : index
    %c0_30 = arith.constant 0 : index
    %39 = vector.load %arg2[%c6, %c0_29, %c0_30] : memref<9x16x8xf32, #tpu.memory_space<vmem>>, vector<1x16x8xf32>
    %40 = vector.shape_cast %39 : vector<1x16x8xf32> to vector<16x8xf32>
    %cst_31 = arith.constant dense<0.000000e+00> : vector<16x128xf32>
    %41 = tpu.matmul %40, %38, %cst_31 {dimension_numbers = #tpu.dot_dimension_numbers<[1], [0], [0], [1], [0, 0, 1, 1], [], []>} : vector<16x8xf32>, vector<8x128xf32>, vector<16x128xf32> -> vector<16x128xf32>
    %42 = arith.addf %37, %41 : vector<16x128xf32>
    %43 = vector.extract_strided_slice %6 {offsets = [0, 14], sizes = [8, 128], strides = [1, 1]} : vector<8x144xf32> to vector<8x128xf32>
    %c7 = arith.constant 7 : index
    %c0_32 = arith.constant 0 : index
    %c0_33 = arith.constant 0 : index
    %44 = vector.load %arg2[%c7, %c0_32, %c0_33] : memref<9x16x8xf32, #tpu.memory_space<vmem>>, vector<1x16x8xf32>
    %45 = vector.shape_cast %44 : vector<1x16x8xf32> to vector<16x8xf32>
    %cst_34 = arith.constant dense<0.000000e+00> : vector<16x128xf32>
    %46 = tpu.matmul %45, %43, %cst_34 {dimension_numbers = #tpu.dot_dimension_numbers<[1], [0], [0], [1], [0, 0, 1, 1], [], []>} : vector<16x8xf32>, vector<8x128xf32>, vector<16x128xf32> -> vector<16x128xf32>
    %47 = arith.addf %42, %46 : vector<16x128xf32>
    %48 = vector.extract_strided_slice %6 {offsets = [0, 16], sizes = [8, 128], strides = [1, 1]} : vector<8x144xf32> to vector<8x128xf32>
    %c8_35 = arith.constant 8 : index
    %c0_36 = arith.constant 0 : index
    %c0_37 = arith.constant 0 : index
    %49 = vector.load %arg2[%c8_35, %c0_36, %c0_37] : memref<9x16x8xf32, #tpu.memory_space<vmem>>, vector<1x16x8xf32>
    %50 = vector.shape_cast %49 : vector<1x16x8xf32> to vector<16x8xf32>
    %cst_38 = arith.constant dense<0.000000e+00> : vector<16x128xf32>
    %51 = tpu.matmul %50, %48, %cst_38 {dimension_numbers = #tpu.dot_dimension_numbers<[1], [0], [0], [1], [0, 0, 1, 1], [], []>} : vector<16x8xf32>, vector<8x128xf32>, vector<16x128xf32> -> vector<16x128xf32>
    %52 = arith.addf %47, %51 : vector<16x128xf32>
    %53 = vector.broadcast %2 : vector<16x1xf32> to vector<16x128xf32>
    %54 = arith.addf %52, %53 : vector<16x128xf32>
    %cst_39 = arith.constant 0.000000e+00 : f32
    %55 = vector.broadcast %cst_39 : f32 to vector<16x128xf32>
    %56 = arith.maximumf %54, %55 : vector<16x128xf32>
    %c0_40 = arith.constant 0 : index
    %c0_41 = arith.constant 0 : index
    %57 = vector.load %arg6[%c0_40, %c0_41] : memref<16x8xf32, #tpu.memory_space<vmem>>, vector<16x8xf32>
    %cst_42 = arith.constant dense<0.000000e+00> : vector<16x128xf32>
    %58 = tpu.matmul %57, %1, %cst_42 {dimension_numbers = #tpu.dot_dimension_numbers<[1], [0], [0], [1], [0, 0, 1, 1], [], []>} : vector<16x8xf32>, vector<8x128xf32>, vector<16x128xf32> -> vector<16x128xf32>
    %c0_43 = arith.constant 0 : index
    %c0_44 = arith.constant 0 : index
    %59 = vector.load %arg7[%c0_43, %c0_44] : memref<16x1xf32, #tpu.memory_space<vmem>>, vector<16x1xf32>
    %60 = vector.broadcast %59 : vector<16x1xf32> to vector<16x128xf32>
    %61 = arith.addf %58, %60 : vector<16x128xf32>
    %cst_45 = arith.constant 0.000000e+00 : f32
    %62 = vector.broadcast %cst_45 : f32 to vector<16x128xf32>
    %63 = arith.maximumf %61, %62 : vector<16x128xf32>
    %c0_46 = arith.constant 0 : index
    %c0_47 = arith.constant 0 : index
    %64 = vector.load %arg5[%c0_46, %c0_47] : memref<16x1xf32, #tpu.memory_space<vmem>>, vector<16x1xf32>
    %cst_48 = arith.constant 0.000000e+00 : f32
    %65 = vector.broadcast %cst_48 : f32 to vector<16x144xf32>
    %c0_49 = arith.constant 0 : index
    %c0_50 = arith.constant 0 : index
    %66 = vector.load %arg10[%c0_49, %c0_50] : memref<16x144xf32, #tpu.memory_space<vmem>>, vector<16x144xf32>
    tpu.vector_store %arg10[%c0_49, %c0_50], %65 {strides = array<i32>} : memref<16x144xf32, #tpu.memory_space<vmem>>, vector<16x144xf32>,
    %c0_51 = arith.constant 0 : index
    %c8_52 = arith.constant 8 : index
    %67 = vector.load %arg10[%c0_51, %c8_52] : memref<16x144xf32, #tpu.memory_space<vmem>>, vector<16x128xf32>
    tpu.vector_store %arg10[%c0_51, %c8_52], %56 {strides = array<i32>} : memref<16x144xf32, #tpu.memory_space<vmem>>, vector<16x128xf32>,
    %c0_53 = arith.constant 0 : index
    %c0_54 = arith.constant 0 : index
    %68 = vector.load %arg10[%c0_53, %c0_54] : memref<16x144xf32, #tpu.memory_space<vmem>>, vector<16x144xf32>
    %cst_55 = arith.constant 0.000000e+00 : f32
    %69 = vector.broadcast %cst_55 : f32 to vector<16x128xf32>
    %70 = vector.extract_strided_slice %68 {offsets = [0, 0], sizes = [16, 128], strides = [1, 1]} : vector<16x144xf32> to vector<16x128xf32>
    %c0_56 = arith.constant 0 : index
    %c0_57 = arith.constant 0 : index
    %c0_58 = arith.constant 0 : index
    %71 = vector.load %arg4[%c0_56, %c0_57, %c0_58] : memref<9x16x16xf32, #tpu.memory_space<vmem>>, vector<1x16x16xf32>
    %72 = vector.shape_cast %71 : vector<1x16x16xf32> to vector<16x16xf32>
    %cst_59 = arith.constant dense<0.000000e+00> : vector<16x128xf32>
    %73 = tpu.matmul %72, %70, %cst_59 {dimension_numbers = #tpu.dot_dimension_numbers<[1], [0], [0], [1], [0, 0, 1, 1], [], []>} : vector<16x16xf32>, vector<16x128xf32>, vector<16x128xf32> -> vector<16x128xf32>
    %74 = arith.addf %69, %73 : vector<16x128xf32>
    %75 = vector.extract_strided_slice %68 {offsets = [0, 2], sizes = [16, 128], strides = [1, 1]} : vector<16x144xf32> to vector<16x128xf32>
    %c1_60 = arith.constant 1 : index
    %c0_61 = arith.constant 0 : index
    %c0_62 = arith.constant 0 : index
    %76 = vector.load %arg4[%c1_60, %c0_61, %c0_62] : memref<9x16x16xf32, #tpu.memory_space<vmem>>, vector<1x16x16xf32>
    %77 = vector.shape_cast %76 : vector<1x16x16xf32> to vector<16x16xf32>
    %cst_63 = arith.constant dense<0.000000e+00> : vector<16x128xf32>
    %78 = tpu.matmul %77, %75, %cst_63 {dimension_numbers = #tpu.dot_dimension_numbers<[1], [0], [0], [1], [0, 0, 1, 1], [], []>} : vector<16x16xf32>, vector<16x128xf32>, vector<16x128xf32> -> vector<16x128xf32>
    %79 = arith.addf %74, %78 : vector<16x128xf32>
    %80 = vector.extract_strided_slice %68 {offsets = [0, 4], sizes = [16, 128], strides = [1, 1]} : vector<16x144xf32> to vector<16x128xf32>
    %c2_64 = arith.constant 2 : index
    %c0_65 = arith.constant 0 : index
    %c0_66 = arith.constant 0 : index
    %81 = vector.load %arg4[%c2_64, %c0_65, %c0_66] : memref<9x16x16xf32, #tpu.memory_space<vmem>>, vector<1x16x16xf32>
    %82 = vector.shape_cast %81 : vector<1x16x16xf32> to vector<16x16xf32>
    %cst_67 = arith.constant dense<0.000000e+00> : vector<16x128xf32>
    %83 = tpu.matmul %82, %80, %cst_67 {dimension_numbers = #tpu.dot_dimension_numbers<[1], [0], [0], [1], [0, 0, 1, 1], [], []>} : vector<16x16xf32>, vector<16x128xf32>, vector<16x128xf32> -> vector<16x128xf32>
    %84 = arith.addf %79, %83 : vector<16x128xf32>
    %85 = vector.extract_strided_slice %68 {offsets = [0, 6], sizes = [16, 128], strides = [1, 1]} : vector<16x144xf32> to vector<16x128xf32>
    %c3_68 = arith.constant 3 : index
    %c0_69 = arith.constant 0 : index
    %c0_70 = arith.constant 0 : index
    %86 = vector.load %arg4[%c3_68, %c0_69, %c0_70] : memref<9x16x16xf32, #tpu.memory_space<vmem>>, vector<1x16x16xf32>
    %87 = vector.shape_cast %86 : vector<1x16x16xf32> to vector<16x16xf32>
    %cst_71 = arith.constant dense<0.000000e+00> : vector<16x128xf32>
    %88 = tpu.matmul %87, %85, %cst_71 {dimension_numbers = #tpu.dot_dimension_numbers<[1], [0], [0], [1], [0, 0, 1, 1], [], []>} : vector<16x16xf32>, vector<16x128xf32>, vector<16x128xf32> -> vector<16x128xf32>
    %89 = arith.addf %84, %88 : vector<16x128xf32>
    %90 = vector.extract_strided_slice %68 {offsets = [0, 8], sizes = [16, 128], strides = [1, 1]} : vector<16x144xf32> to vector<16x128xf32>
    %c4_72 = arith.constant 4 : index
    %c0_73 = arith.constant 0 : index
    %c0_74 = arith.constant 0 : index
    %91 = vector.load %arg4[%c4_72, %c0_73, %c0_74] : memref<9x16x16xf32, #tpu.memory_space<vmem>>, vector<1x16x16xf32>
    %92 = vector.shape_cast %91 : vector<1x16x16xf32> to vector<16x16xf32>
    %cst_75 = arith.constant dense<0.000000e+00> : vector<16x128xf32>
    %93 = tpu.matmul %92, %90, %cst_75 {dimension_numbers = #tpu.dot_dimension_numbers<[1], [0], [0], [1], [0, 0, 1, 1], [], []>} : vector<16x16xf32>, vector<16x128xf32>, vector<16x128xf32> -> vector<16x128xf32>
    %94 = arith.addf %89, %93 : vector<16x128xf32>
    %95 = vector.extract_strided_slice %68 {offsets = [0, 10], sizes = [16, 128], strides = [1, 1]} : vector<16x144xf32> to vector<16x128xf32>
    %c5_76 = arith.constant 5 : index
    %c0_77 = arith.constant 0 : index
    %c0_78 = arith.constant 0 : index
    %96 = vector.load %arg4[%c5_76, %c0_77, %c0_78] : memref<9x16x16xf32, #tpu.memory_space<vmem>>, vector<1x16x16xf32>
    %97 = vector.shape_cast %96 : vector<1x16x16xf32> to vector<16x16xf32>
    %cst_79 = arith.constant dense<0.000000e+00> : vector<16x128xf32>
    %98 = tpu.matmul %97, %95, %cst_79 {dimension_numbers = #tpu.dot_dimension_numbers<[1], [0], [0], [1], [0, 0, 1, 1], [], []>} : vector<16x16xf32>, vector<16x128xf32>, vector<16x128xf32> -> vector<16x128xf32>
    %99 = arith.addf %94, %98 : vector<16x128xf32>
    %100 = vector.extract_strided_slice %68 {offsets = [0, 12], sizes = [16, 128], strides = [1, 1]} : vector<16x144xf32> to vector<16x128xf32>
    %c6_80 = arith.constant 6 : index
    %c0_81 = arith.constant 0 : index
    %c0_82 = arith.constant 0 : index
    %101 = vector.load %arg4[%c6_80, %c0_81, %c0_82] : memref<9x16x16xf32, #tpu.memory_space<vmem>>, vector<1x16x16xf32>
    %102 = vector.shape_cast %101 : vector<1x16x16xf32> to vector<16x16xf32>
    %cst_83 = arith.constant dense<0.000000e+00> : vector<16x128xf32>
    %103 = tpu.matmul %102, %100, %cst_83 {dimension_numbers = #tpu.dot_dimension_numbers<[1], [0], [0], [1], [0, 0, 1, 1], [], []>} : vector<16x16xf32>, vector<16x128xf32>, vector<16x128xf32> -> vector<16x128xf32>
    %104 = arith.addf %99, %103 : vector<16x128xf32>
    %105 = vector.extract_strided_slice %68 {offsets = [0, 14], sizes = [16, 128], strides = [1, 1]} : vector<16x144xf32> to vector<16x128xf32>
    %c7_84 = arith.constant 7 : index
    %c0_85 = arith.constant 0 : index
    %c0_86 = arith.constant 0 : index
    %106 = vector.load %arg4[%c7_84, %c0_85, %c0_86] : memref<9x16x16xf32, #tpu.memory_space<vmem>>, vector<1x16x16xf32>
    %107 = vector.shape_cast %106 : vector<1x16x16xf32> to vector<16x16xf32>
    %cst_87 = arith.constant dense<0.000000e+00> : vector<16x128xf32>
    %108 = tpu.matmul %107, %105, %cst_87 {dimension_numbers = #tpu.dot_dimension_numbers<[1], [0], [0], [1], [0, 0, 1, 1], [], []>} : vector<16x16xf32>, vector<16x128xf32>, vector<16x128xf32> -> vector<16x128xf32>
    %109 = arith.addf %104, %108 : vector<16x128xf32>
    %110 = vector.extract_strided_slice %68 {offsets = [0, 16], sizes = [16, 128], strides = [1, 1]} : vector<16x144xf32> to vector<16x128xf32>
    %c8_88 = arith.constant 8 : index
    %c0_89 = arith.constant 0 : index
    %c0_90 = arith.constant 0 : index
    %111 = vector.load %arg4[%c8_88, %c0_89, %c0_90] : memref<9x16x16xf32, #tpu.memory_space<vmem>>, vector<1x16x16xf32>
    %112 = vector.shape_cast %111 : vector<1x16x16xf32> to vector<16x16xf32>
    %cst_91 = arith.constant dense<0.000000e+00> : vector<16x128xf32>
    %113 = tpu.matmul %112, %110, %cst_91 {dimension_numbers = #tpu.dot_dimension_numbers<[1], [0], [0], [1], [0, 0, 1, 1], [], []>} : vector<16x16xf32>, vector<16x128xf32>, vector<16x128xf32> -> vector<16x128xf32>
    %114 = arith.addf %109, %113 : vector<16x128xf32>
    %115 = vector.broadcast %64 : vector<16x1xf32> to vector<16x128xf32>
    %116 = arith.addf %114, %115 : vector<16x128xf32>
    %117 = arith.addf %116, %63 : vector<16x128xf32>
    %cst_92 = arith.constant 0.000000e+00 : f32
    %118 = vector.broadcast %cst_92 : f32 to vector<16x128xf32>
    %119 = arith.maximumf %117, %118 : vector<16x128xf32>
    %c0_93 = arith.constant 0 : index
    %c0_94 = arith.constant 0 : index
    %c0_95 = arith.constant 0 : index
    %120 = vector.load %arg8[%c0_93, %c0_94, %c0_95] : memref<1x16x128xf32, #tpu.memory_space<vmem>>, vector<1x16x128xf32>
    %121 = vector.shape_cast %120 : vector<1x16x128xf32> to vector<16x128xf32>
    %122 = vector.shape_cast %119 : vector<16x128xf32> to vector<1x16x128xf32>
    tpu.vector_store %arg8[%c0_93, %c0_94, %c0_95], %122 {strides = array<i32>} : memref<1x16x128xf32, #tpu.memory_space<vmem>>, vector<1x16x128xf32>,
    return
  }
  func.func @transform_0(%arg0: i32) -> (i32, i32, i32) {
    %c0_i32 = arith.constant 0 : i32
    %c0_i32_0 = arith.constant 0 : i32
    %c0_i32_1 = arith.constant 0 : i32
    return %arg0, %c0_i32, %c0_i32_0 : i32, i32, i32
  }
  func.func @transform_1(%arg0: i32) -> (i32, i32, i32) {
    %c0_i32 = arith.constant 0 : i32
    %c0_i32_0 = arith.constant 0 : i32
    %c0_i32_1 = arith.constant 0 : i32
    %c0_i32_2 = arith.constant 0 : i32
    return %c0_i32, %c0_i32_0, %c0_i32_1 : i32, i32, i32
  }
  func.func @transform_2(%arg0: i32) -> (i32, i32) {
    %c0_i32 = arith.constant 0 : i32
    %c0_i32_0 = arith.constant 0 : i32
    %c0_i32_1 = arith.constant 0 : i32
    return %c0_i32, %c0_i32_0 : i32, i32
  }
  func.func @transform_3(%arg0: i32) -> (i32, i32, i32) {
    %c0_i32 = arith.constant 0 : i32
    %c0_i32_0 = arith.constant 0 : i32
    %c0_i32_1 = arith.constant 0 : i32
    %c0_i32_2 = arith.constant 0 : i32
    return %c0_i32, %c0_i32_0, %c0_i32_1 : i32, i32, i32
  }
  func.func @transform_4(%arg0: i32) -> (i32, i32) {
    %c0_i32 = arith.constant 0 : i32
    %c0_i32_0 = arith.constant 0 : i32
    %c0_i32_1 = arith.constant 0 : i32
    return %c0_i32, %c0_i32_0 : i32, i32
  }
  func.func @transform_5(%arg0: i32) -> (i32, i32) {
    %c0_i32 = arith.constant 0 : i32
    %c0_i32_0 = arith.constant 0 : i32
    %c0_i32_1 = arith.constant 0 : i32
    return %c0_i32, %c0_i32_0 : i32, i32
  }
  func.func @transform_6(%arg0: i32) -> (i32, i32) {
    %c0_i32 = arith.constant 0 : i32
    %c0_i32_0 = arith.constant 0 : i32
    %c0_i32_1 = arith.constant 0 : i32
    return %c0_i32, %c0_i32_0 : i32, i32
  }
  func.func @transform_7(%arg0: i32) -> (i32, i32, i32) {
    %c0_i32 = arith.constant 0 : i32
    %c0_i32_0 = arith.constant 0 : i32
    %c0_i32_1 = arith.constant 0 : i32
    return %arg0, %c0_i32, %c0_i32_0 : i32, i32, i32
  }
}

</mosaic_0001>

<llo_original>
// kernel: tpu_custom_call.1
$region0: #{tpu_custom_call.1}
  #allocation0 [shape = 'u32[]', space=smem, size = 0x4, offset = 0x4, fixed_abs, tag = 'smem constant byte address 0x4 - core index']
  #allocation1 [shape = 'u32[144,128]{1,0:T(1,128)}', space=vmem, size = 0x12000, scoped, tag = 'internal scratch']
  #allocation2 [shape = 'f32[8,144]{1,0:T(8,128)}', space=vmem, size = 0x2000, scoped, tag = 'scratch operand']
  #allocation3 [shape = 'f32[16,144]{1,0:T(8,128)}', space=vmem, size = 0x4000, scoped, tag = 'scratch operand']
  %s0 = inlined_call_operand.vmem [shape: f32[2,8,128], index: 0, kind: input, shape index: {}]
  %s1 = inlined_call_operand.vmem [shape: f32[9,16,8], index: 1, kind: input, shape index: {}]
  %s2 = inlined_call_operand.vmem [shape: f32[16,1], index: 2, kind: input, shape index: {}]
  %s3 = inlined_call_operand.vmem [shape: f32[9,16,16], index: 3, kind: input, shape index: {}]
  %s4 = inlined_call_operand.vmem [shape: f32[16,1], index: 4, kind: input, shape index: {}]
  %s5 = inlined_call_operand.vmem [shape: f32[16,8], index: 5, kind: input, shape index: {}]
  %s6 = inlined_call_operand.vmem [shape: f32[16,1], index: 6, kind: input, shape index: {}]
  %s7 = inlined_call_operand.hbm [shape: f32[2,16,128], index: 7, kind: output, shape index: {}]
  %s8 = sld [smem:[#allocation0]]
  $region61: #{tpu_custom_call.1} parent=0
    _
  %s10 = ssub.s32 1, %s8
  %s11 = scalar_select 0, %s10, %s8
  $region1: #{tpu_custom_call.1} parent=0
    #allocation4 [shape = 'u8[16384]{0}', space=vmem, size = 0x4000, scoped, tag = 'output window, operand 0']
    #allocation5 [shape = 's32[2]{0}', space=sflag, size = 0x8, scoped, tag = 'scoped memory for tpu_custom_call.1']
    %12 = vsyncpa [#allocation5], 0
    %s13 = scalar_lea.sflag [#allocation5], 1
    %14 = vsyncpa %s13, 0
    loop: start=0, step=1, limit=4
    $region2: #{tpu_custom_call.1} parent=1 // loop_pre_header
      _
    $region3: #{tpu_custom_call.1} parent=1 // loop_header
      %s16 = sphi 0, %s20
      %p17 = scmp.ge.s32.totalorder %s16, 4
      %s26 = sphi 0, %s28
      %s29 = sphi 0, %s26
      %s30 = sphi 0, %s29
      %s46 = sphi 0, %s30
      %s50 = sphi 0, %s50
      %s52 = sphi 0, %s50
      %s53 = sphi 0, %s52
      %s67 = sphi 0, %s53
      %s71 = sphi 0, %s71
      %s73 = sphi 0, %s71
      %s74 = sphi 0, %s73
      %s88 = sphi 0, %s74
      %s92 = sphi 0, %s92
      %s94 = sphi 0, %s92
      %s95 = sphi 0, %s94
      %s109 = sphi 0, %s95
      %s113 = sphi 0, %s113
      %s115 = sphi 0, %s113
      %s116 = sphi 0, %s115
      %s130 = sphi 0, %s116
      %s134 = sphi 0, %s134
      %s136 = sphi 0, %s134
      %s137 = sphi 0, %s136
      %s151 = sphi 0, %s137
      %s155 = sphi 0, %s155
      %s157 = sphi 0, %s155
      %s158 = sphi 0, %s157
      %s172 = sphi 0, %s158
      %s178 = sphi 0, %s180
      %s181 = sphi 0, %s178
      %s182 = sphi 0, %s181
      %s198 = sphi 0, %s182
    $region4: #{tpu_custom_call.1} parent=1 // loop_header_branch
      %19 = sbr.rel (%p17) target = $region8
    $region5: #{tpu_custom_call.1} parent=1 // loop_body
      %s21 = ssub.s32 %s16, 1
      %s22 = ssub.s32 %s16, 2
      %s23 = sadd.s32 %s16, 1
      %s24 = ssub.s32 %s16, %s23
      %p25 = scmp.eq.s32.totalorder %s24, 0
      %s27 = sadd.s32 %s26, 1
      %s28 = scalar_select %p25, %s26, %s27
      %p31 = pneg %p25
      %p32 = scmp.eq.s32.totalorder %s16, 1
      %p33 = por %p31, %p32
      %p34 = scmp.ne.s32.totalorder %s26, %s29
      %p35 = scmp.eq.s32.totalorder %s16, 0
      %p36 = por %p34, %p35
      %p37 = scmp.ne.s32.totalorder %s26, %s29
      %p38 = scmp.eq.s32.totalorder %s21, 1
      %p39 = por %p37, %p38
      %p40 = scmp.ne.s32.totalorder %s29, %s30
      %p41 = scmp.eq.s32.totalorder %s21, 0
      %p42 = por %p40, %p41
      %p43 = scmp.ne.s32.totalorder %s29, %s30
      %p44 = scmp.eq.s32.totalorder %s22, 1
      %p45 = por %p43, %p44
      %p47 = scmp.ne.s32.totalorder %s30, %s46
      %p48 = scmp.eq.s32.totalorder %s22, 0
      %p49 = por %p47, %p48
      %s51 = sadd.s32 %s50, 1
      %p54 = scmp.eq.s32.totalorder %s16, 1
      %p55 = scmp.ne.s32.totalorder %s50, %s52
      %p56 = scmp.eq.s32.totalorder %s16, 0
      %p57 = por %p55, %p56
      %p58 = scmp.ne.s32.totalorder %s50, %s52
      %p59 = scmp.eq.s32.totalorder %s21, 1
      %p60 = por %p58, %p59
      %p61 = scmp.ne.s32.totalorder %s52, %s53
      %p62 = scmp.eq.s32.totalorder %s21, 0
      %p63 = por %p61, %p62
      %p64 = scmp.ne.s32.totalorder %s52, %s53
      %p65 = scmp.eq.s32.totalorder %s22, 1
      %p66 = por %p64, %p65
      %p68 = scmp.ne.s32.totalorder %s53, %s67
      %p69 = scmp.eq.s32.totalorder %s22, 0
      %p70 = por %p68, %p69
      %s72 = sadd.s32 %s71, 1
      %p75 = scmp.eq.s32.totalorder %s16, 1
      %p76 = scmp.ne.s32.totalorder %s71, %s73
      %p77 = scmp.eq.s32.totalorder %s16, 0
      %p78 = por %p76, %p77
      %p79 = scmp.ne.s32.totalorder %s71, %s73
      %p80 = scmp.eq.s32.totalorder %s21, 1
      %p81 = por %p79, %p80
      %p82 = scmp.ne.s32.totalorder %s73, %s74
      %p83 = scmp.eq.s32.totalorder %s21, 0
      %p84 = por %p82, %p83
      %p85 = scmp.ne.s32.totalorder %s73, %s74
      %p86 = scmp.eq.s32.totalorder %s22, 1
      %p87 = por %p85, %p86
      %p89 = scmp.ne.s32.totalorder %s74, %s88
      %p90 = scmp.eq.s32.totalorder %s22, 0
      %p91 = por %p89, %p90
      %s93 = sadd.s32 %s92, 1
      %p96 = scmp.eq.s32.totalorder %s16, 1
      %p97 = scmp.ne.s32.totalorder %s92, %s94
      %p98 = scmp.eq.s32.totalorder %s16, 0
      %p99 = por %p97, %p98
      %p100 = scmp.ne.s32.totalorder %s92, %s94
      %p101 = scmp.eq.s32.totalorder %s21, 1
      %p102 = por %p100, %p101
      %p103 = scmp.ne.s32.totalorder %s94, %s95
      %p104 = scmp.eq.s32.totalorder %s21, 0
      %p105 = por %p103, %p104
      %p106 = scmp.ne.s32.totalorder %s94, %s95
      %p107 = scmp.eq.s32.totalorder %s22, 1
      %p108 = por %p106, %p107
      %p110 = scmp.ne.s32.totalorder %s95, %s109
      %p111 = scmp.eq.s32.totalorder %s22, 0
      %p112 = por %p110, %p111
      %s114 = sadd.s32 %s113, 1
      %p117 = scmp.eq.s32.totalorder %s16, 1
      %p118 = scmp.ne.s32.totalorder %s113, %s115
      %p119 = scmp.eq.s32.totalorder %s16, 0
      %p120 = por %p118, %p119
      %p121 = scmp.ne.s32.totalorder %s113, %s115
      %p122 = scmp.eq.s32.totalorder %s21, 1
      %p123 = por %p121, %p122
      %p124 = scmp.ne.s32.totalorder %s115, %s116
      %p125 = scmp.eq.s32.totalorder %s21, 0
      %p126 = por %p124, %p125
      %p127 = scmp.ne.s32.totalorder %s115, %s116
      %p128 = scmp.eq.s32.totalorder %s22, 1
      %p129 = por %p127, %p128
      %p131 = scmp.ne.s32.totalorder %s116, %s130
      %p132 = scmp.eq.s32.totalorder %s22, 0
      %p133 = por %p131, %p132
      %s135 = sadd.s32 %s134, 1
      %p138 = scmp.eq.s32.totalorder %s16, 1
      %p139 = scmp.ne.s32.totalorder %s134, %s136
      %p140 = scmp.eq.s32.totalorder %s16, 0
      %p141 = por %p139, %p140
      %p142 = scmp.ne.s32.totalorder %s134, %s136
      %p143 = scmp.eq.s32.totalorder %s21, 1
      %p144 = por %p142, %p143
      %p145 = scmp.ne.s32.totalorder %s136, %s137
      %p146 = scmp.eq.s32.totalorder %s21, 0
      %p147 = por %p145, %p146
      %p148 = scmp.ne.s32.totalorder %s136, %s137
      %p149 = scmp.eq.s32.totalorder %s22, 1
      %p150 = por %p148, %p149
      %p152 = scmp.ne.s32.totalorder %s137, %s151
      %p153 = scmp.eq.s32.totalorder %s22, 0
      %p154 = por %p152, %p153
      %s156 = sadd.s32 %s155, 1
      %p159 = scmp.eq.s32.totalorder %s16, 1
      %p160 = scmp.ne.s32.totalorder %s155, %s157
      %p161 = scmp.eq.s32.totalorder %s16, 0
      %p162 = por %p160, %p161
      %p163 = scmp.ne.s32.totalorder %s155, %s157
      %p164 = scmp.eq.s32.totalorder %s21, 1
      %p165 = por %p163, %p164
      %p166 = scmp.ne.s32.totalorder %s157, %s158
      %p167 = scmp.eq.s32.totalorder %s21, 0
      %p168 = por %p166, %p167
      %p169 = scmp.ne.s32.totalorder %s157, %s158
      %p170 = scmp.eq.s32.totalorder %s22, 1
      %p171 = por %p169, %p170
      %p173 = scmp.ne.s32.totalorder %s158, %s172
      %p174 = scmp.eq.s32.totalorder %s22, 0
      %p175 = por %p173, %p174
      %s176 = ssub.s32 %s16, %s23
      %p177 = scmp.eq.s32.totalorder %s176, 0
      %s179 = sadd.s32 %s178, 1
      %s180 = scalar_select %p177, %s178, %s179
      %p183 = pneg %p177
      %p184 = scmp.eq.s32.totalorder %s16, 1
      %p185 = por %p183, %p184
      %p186 = scmp.ne.s32.totalorder %s178, %s181
      %p187 = scmp.eq.s32.totalorder %s16, 0
      %p188 = por %p186, %p187
      %p189 = scmp.ne.s32.totalorder %s178, %s181
      %p190 = scmp.eq.s32.totalorder %s21, 1
      %p191 = por %p189, %p190
      %p192 = scmp.ne.s32.totalorder %s181, %s182
      %p193 = scmp.eq.s32.totalorder %s21, 0
      %p194 = por %p192, %p193
      %p195 = scmp.ne.s32.totalorder %s181, %s182
      %p196 = scmp.eq.s32.totalorder %s22, 1
      %p197 = por %p195, %p196
      %p199 = scmp.ne.s32.totalorder %s182, %s198
      %p200 = scmp.eq.s32.totalorder %s22, 0
      %p201 = por %p199, %p200
      %p202 = scmp.le.s32.totalorder 1, %s16
      %p203 = scmp.lt.s32.totalorder %s16, 3
      %p204 = pnand %p202, %p203
      %p205 = pneg %p204
      // Predicated region
      $region9: #{tpu_custom_call.1} parent=5 // pred_check
        _
      $region10: #{tpu_custom_call.1} parent=5 // pred_check_branch
        %207 = sbr.rel (%p204) target = $region12
      $region11: #{tpu_custom_call.1} parent=5 // pred_region
        %s208 = ssub.s32 %s16, 1
        // Predicated region
        $region13: #{tpu_custom_call.1} parent=11 // pred_check
          %p209 = pneg %p63
        $region14: #{tpu_custom_call.1} parent=11 // pred_check_branch
          %211 = sbr.rel (%p209) target = $region16
        $region15: #{tpu_custom_call.1} parent=11 // pred_region
          _
        $region16: #{tpu_custom_call.1} parent=11 // pred_fallthru
          _
        // Predicated region
        $region17: #{tpu_custom_call.1} parent=11 // pred_check
          %p212 = pneg %p84
        $region18: #{tpu_custom_call.1} parent=11 // pred_check_branch
          %214 = sbr.rel (%p212) target = $region20
        $region19: #{tpu_custom_call.1} parent=11 // pred_region
          _
        $region20: #{tpu_custom_call.1} parent=11 // pred_fallthru
          _
        // Predicated region
        $region21: #{tpu_custom_call.1} parent=11 // pred_check
          %p215 = pneg %p105
        $region22: #{tpu_custom_call.1} parent=11 // pred_check_branch
          %217 = sbr.rel (%p215) target = $region24
        $region23: #{tpu_custom_call.1} parent=11 // pred_region
          _
        $region24: #{tpu_custom_call.1} parent=11 // pred_fallthru
          _
        // Predicated region
        $region25: #{tpu_custom_call.1} parent=11 // pred_check
          %p218 = pneg %p126
        $region26: #{tpu_custom_call.1} parent=11 // pred_check_branch
          %220 = sbr.rel (%p218) target = $region28
        $region27: #{tpu_custom_call.1} parent=11 // pred_region
          _
        $region28: #{tpu_custom_call.1} parent=11 // pred_fallthru
          _
        // Predicated region
        $region29: #{tpu_custom_call.1} parent=11 // pred_check
          %p221 = pneg %p147
        $region30: #{tpu_custom_call.1} parent=11 // pred_check_branch
          %223 = sbr.rel (%p221) target = $region32
        $region31: #{tpu_custom_call.1} parent=11 // pred_region
          _
        $region32: #{tpu_custom_call.1} parent=11 // pred_fallthru
          _
        // Predicated region
        $region33: #{tpu_custom_call.1} parent=11 // pred_check
          %p224 = pneg %p168
        $region34: #{tpu_custom_call.1} parent=11 // pred_check_branch
          %226 = sbr.rel (%p224) target = $region36
        $region35: #{tpu_custom_call.1} parent=11 // pred_region
          _
        $region36: #{tpu_custom_call.1} parent=11 // pred_fallthru
          _
      $region12: #{tpu_custom_call.1} parent=5 // pred_fallthru
        _
      %p227 = scmp.lt.s32.totalorder %s16, 2
      // Predicated region
      $region37: #{tpu_custom_call.1} parent=5 // pred_check
        %p228 = pneg %p227
      $region38: #{tpu_custom_call.1} parent=5 // pred_check_branch
        %230 = sbr.rel (%p228) target = $region40
      $region39: #{tpu_custom_call.1} parent=5 // pred_region
        // Predicated region
        $region41: #{tpu_custom_call.1} parent=39 // pred_check
          %p231 = pneg %p36
        $region42: #{tpu_custom_call.1} parent=39 // pred_check_branch
          %233 = sbr.rel (%p231) target = $region44
        $region43: #{tpu_custom_call.1} parent=39 // pred_region
          %p234 = scmp.lt.s32.totalorder %s16, 1
          %s235 = scalar_select %p234, %s16, 1
          %s236 = smul.addr %s235, 8
          %s237 = scalar_lea.vmem %s0, %s236
        $region44: #{tpu_custom_call.1} parent=39 // pred_fallthru
          _
      $region40: #{tpu_custom_call.1} parent=5 // pred_fallthru
        _
      %p238 = scmp.le.s32.totalorder 1, %s16
      %p239 = scmp.lt.s32.totalorder %s16, 3
      %p240 = pnand %p238, %p239
      %p241 = pneg %p240
      // Predicated region
      $region45: #{tpu_custom_call.1} parent=5 // pred_check
        _
      $region46: #{tpu_custom_call.1} parent=5 // pred_check_branch
        %243 = sbr.rel (%p240) target = $region48
      $region47: #{tpu_custom_call.1} parent=5 // pred_region
        %s244 = ssub.s32 %s16, 1
        %p245 = scmp.lt.s32.totalorder %s21, 1
        %s246 = scalar_select %p245, %s21, 1
        %s247 = smul.addr %s246, 8
        %s248 = scalar_lea.vmem %s0, %s247
        %p249 = pneg %p42
        %p250 = pneg %p39
        %p251 = pneg %p63
        %p252 = pneg %p60
        %p253 = pneg %p84
        %p254 = pneg %p81
        %p255 = pneg %p105
        %p256 = pneg %p102
        %p257 = pneg %p126
        %p258 = pneg %p123
        %p259 = pneg %p147
        %p260 = pneg %p144
        %p261 = pneg %p168
        %p262 = pneg %p165
        %p263 = pneg %p194
        %p264 = pneg %p191
        %s265 = sand.u32 %s181, 1
        %s266 = scalar_lea.sflag [#allocation5], %s265
        %s267 = sand.u32 %s181, 1
        %s268 = smul.addr %s267, 16
        %s269 = scalar_lea.vmem [#allocation4], %s268
        %p270 = scmp.lt.s32.totalorder %s21, 1
        %s271 = scalar_select %p270, %s21, 1
        %s272 = smul.addr %s271, 8
        %s273 = scalar_lea.vmem %s0, %s272
        %v274 = vld [vmem:[%s273] sm:$0xff]
        %v275 = vld [vmem:[%s2] sm:$0xff]
        %v276 = vld [vmem:[%s2 + $0x8] sm:$0xff]
        %277 = vst [vmem:[#allocation2] sm:$0xff] 0.0
        %vm278 = vcmask 130048
        %279 = vst.msk [vmem:[#allocation2 + $0x8] sm:$0xff] %vm278, 0.0
        %281 = vrot.lane.b32.xlu0 %v274, 8
        %v282 = vpop.permute.xlu0 %281
        %vm284 = vcmask 1047616
        %285 = vst.msk [vmem:[#allocation2] sm:$0xff] %vm284, %v282
        %vm286 = vcmask 64512
        %287 = vst.msk [vmem:[#allocation2 + $0x8] sm:$0xff] %vm286, %v282
        %v288 = vld [vmem:[#allocation2] sm:$0xff]
        %v289 = vld [vmem:[#allocation2 + $0x8] sm:$0xff]
        %v290 = vld [vmem:[%s1] sm:$0xff]
        %v291 = vld [vmem:[%s1 + $0x8] sm:$0xff]
        %s292 = scalar_lea.vmem %s1, 16
        %v293 = vld [vmem:[%s292] sm:$0xff]
        %v294 = vld [vmem:[%s292 + $0x8] sm:$0xff]
        %297 = vrot.lane.b32.xlu0 %v288, 126
        %v298 = vpop.permute.xlu0 %297
        %299 = vrot.lane.b32.xlu0 %v289, 126
        %v300 = vpop.permute.xlu0 %299
        %vm301 = vcmask 1031168
        %v302 = vsel %vm301, %v298, %v300
        %v305 = vsel %vm286, %v293, 0
        %v308 = vsel %vm286, %v294, 0
        %310 = vmatprep.subr.mxu0 0.0
        %311 = vmatpush1.msra.mxu0 %v302
        %312 = vmatprep.subr.mxu0 0.0
        %313 = vmatpush1.msra.mxu0 0.0
        %314 = vmatprep.subr.mxu0 0.0
        %315 = vmatpush1.msra.mxu0 0.0
        %316 = vmatprep.subr.mxu0 0.0
        %317 = vmatpush1.msra.mxu0 0.0
        %318 = vmatprep.subr.mxu0 0.0
        %319 = vmatpush1.msra.mxu0 0.0
        %320 = vmatprep.subr.mxu0 0.0
        %321 = vmatpush1.msra.mxu0 0.0
        %322 = vmatprep.subr.mxu0 0.0
        %323 = vmatpush1.msra.mxu0 0.0
        %324 = vmatprep.subr.mxu0 0.0
        %325 = vmatpush1.msra.mxu0 0.0
        %326 = vmatprep.subr.mxu0 0.0
        %327 = vmatpush1.msra.mxu0 0.0
        %328 = vmatprep.subr.mxu0 0.0
        %329 = vmatpush1.msra.mxu0 0.0
        %330 = vmatprep.subr.mxu0 0.0
        %331 = vmatpush1.msra.mxu0 0.0
        %332 = vmatprep.subr.mxu0 0.0
        %333 = vmatpush1.msra.mxu0 0.0
        %334 = vmatprep.subr.mxu0 0.0
        %335 = vmatpush1.msra.mxu0 0.0
        %336 = vmatprep.subr.mxu0 0.0
        %337 = vmatpush1.msra.mxu0 0.0
        %338 = vmatprep.subr.mxu0 0.0
        %339 = vmatpush1.msra.mxu0 0.0
        %340 = vmatprep.subr.mxu0 0.0
        %341 = vmatpush1.msra.mxu0 0.0
        %342 = vmatprep.subr.mxu0 0.0
        %343 = vmatpush1.msra.mxu0 0.0
        %344 = vmatprep.subr.mxu0 0.0
        %345 = vmatpush1.msra.mxu0 0.0
        %346 = vmatprep.subr.mxu0 0.0
        %347 = vmatpush1.msra.mxu0 0.0
        %348 = vmatprep.subr.mxu0 0.0
        %349 = vmatpush1.msra.mxu0 0.0
        %350 = vmatprep.subr.mxu0 0.0
        %351 = vmatpush1.msra.mxu0 0.0
        %352 = vmatprep.subr.mxu0 0.0
        %353 = vmatpush1.msra.mxu0 0.0
        %354 = vmatprep.subr.mxu0 0.0
        %355 = vmatpush1.msra.mxu0 0.0
        %356 = vmatprep.subr.mxu0 0.0
        %357 = vmatpush1.msra.mxu0 0.0
        %358 = vmatprep.subr.mxu0 0.0
        %359 = vmatpush1.msra.mxu0 0.0
        %360 = vmatprep.subr.mxu0 0.0
        %361 = vmatpush1.msra.mxu0 0.0
        %362 = vmatprep.subr.mxu0 0.0
        %363 = vmatpush1.msra.mxu0 0.0
        %364 = vmatprep.subr.mxu0 0.0
        %365 = vmatpush1.msra.mxu0 0.0
        %366 = vmatprep.subr.mxu0 0.0
        %367 = vmatpush1.msra.mxu0 0.0
        %368 = vmatprep.subr.mxu0 0.0
        %369 = vmatpush1.msra.mxu0 0.0
        %370 = vmatprep.subr.mxu0 0.0
        %371 = vmatpush1.msra.mxu0 0.0
        %372 = vmatprep.subr.mxu0 0.0
        %373 = vmatpush1.msra.mxu0 0.0
        %374 = vmatprep.mubr.f32.mxu0 0.0
        %375 = vmatmul.mubr.f32.gmra.mrb[0].mxu0 %v305
        %v376 = vpop.f32.mrb[0].mxu0
        %v377 = vadd.f32 0.0, %v376
        %v378 = vpop.f32.mrb[0].mxu0
        %379 = vmatprep.mubr.f32.mxu0 0.0
        %380 = vmatmul.mubr.f32.gmra.mrb[0].mxu0 %v308
        %v381 = vpop.f32.mrb[0].mxu0
        %v382 = vadd.f32 0.0, %v381
        %v383 = vpop.f32.mrb[0].mxu0
        %384 = vdwg.mxu0
        %v386 = vsel %vm286, %v290, 0
        %v389 = vsel %vm286, %v291, 0
        %391 = vmatprep.subr.mxu0 0.0
        %392 = vmatpush1.msra.mxu0 %v288
        %393 = vmatprep.subr.mxu0 0.0
        %394 = vmatpush1.msra.mxu0 0.0
        %395 = vmatprep.subr.mxu0 0.0
        %396 = vmatpush1.msra.mxu0 0.0
        %397 = vmatprep.subr.mxu0 0.0
        %398 = vmatpush1.msra.mxu0 0.0
        %399 = vmatprep.subr.mxu0 0.0
        %400 = vmatpush1.msra.mxu0 0.0
        %401 = vmatprep.subr.mxu0 0.0
        %402 = vmatpush1.msra.mxu0 0.0
        %403 = vmatprep.subr.mxu0 0.0
        %404 = vmatpush1.msra.mxu0 0.0
        %405 = vmatprep.subr.mxu0 0.0
        %406 = vmatpush1.msra.mxu0 0.0
        %407 = vmatprep.subr.mxu0 0.0
        %408 = vmatpush1.msra.mxu0 0.0
        %409 = vmatprep.subr.mxu0 0.0
        %410 = vmatpush1.msra.mxu0 0.0
        %411 = vmatprep.subr.mxu0 0.0
        %412 = vmatpush1.msra.mxu0 0.0
        %413 = vmatprep.subr.mxu0 0.0
        %414 = vmatpush1.msra.mxu0 0.0
        %415 = vmatprep.subr.mxu0 0.0
        %416 = vmatpush1.msra.mxu0 0.0
        %417 = vmatprep.subr.mxu0 0.0
        %418 = vmatpush1.msra.mxu0 0.0
        %419 = vmatprep.subr.mxu0 0.0
        %420 = vmatpush1.msra.mxu0 0.0
        %421 = vmatprep.subr.mxu0 0.0
        %422 = vmatpush1.msra.mxu0 0.0
        %423 = vmatprep.subr.mxu0 0.0
        %424 = vmatpush1.msra.mxu0 0.0
        %425 = vmatprep.subr.mxu0 0.0
        %426 = vmatpush1.msra.mxu0 0.0
        %427 = vmatprep.subr.mxu0 0.0
        %428 = vmatpush1.msra.mxu0 0.0
        %429 = vmatprep.subr.mxu0 0.0
        %430 = vmatpush1.msra.mxu0 0.0
        %431 = vmatprep.subr.mxu0 0.0
        %432 = vmatpush1.msra.mxu0 0.0
        %433 = vmatprep.subr.mxu0 0.0
        %434 = vmatpush1.msra.mxu0 0.0
        %435 = vmatprep.subr.mxu0 0.0
        %436 = vmatpush1.msra.mxu0 0.0
        %437 = vmatprep.subr.mxu0 0.0
        %438 = vmatpush1.msra.mxu0 0.0
        %439 = vmatprep.subr.mxu0 0.0
        %440 = vmatpush1.msra.mxu0 0.0
        %441 = vmatprep.subr.mxu0 0.0
        %442 = vmatpush1.msra.mxu0 0.0
        %443 = vmatprep.subr.mxu0 0.0
        %444 = vmatpush1.msra.mxu0 0.0
        %445 = vmatprep.subr.mxu0 0.0
        %446 = vmatpush1.msra.mxu0 0.0
        %447 = vmatprep.subr.mxu0 0.0
        %448 = vmatpush1.msra.mxu0 0.0
        %449 = vmatprep.subr.mxu0 0.0
        %450 = vmatpush1.msra.mxu0 0.0
        %451 = vmatprep.subr.mxu0 0.0
        %452 = vmatpush1.msra.mxu0 0.0
        %453 = vmatprep.subr.mxu0 0.0
        %454 = vmatpush1.msra.mxu0 0.0
        %455 = vmatprep.mubr.f32.mxu0 0.0
        %456 = vmatmul.mubr.f32.gmra.mrb[0].mxu0 %v386
        %v457 = vpop.f32.mrb[0].mxu0
        %v458 = vadd.f32 %v377, %v457
        %v459 = vpop.f32.mrb[0].mxu0
        %460 = vmatprep.mubr.f32.mxu0 0.0
        %461 = vmatmul.mubr.f32.gmra.mrb[0].mxu0 %v389
        %v462 = vpop.f32.mrb[0].mxu0
        %v463 = vadd.f32 %v382, %v462
        %v464 = vpop.f32.mrb[0].mxu0
        %465 = vdwg.mxu0
        %s466 = scalar_lea.vmem %s1, 32
        %v467 = vld [vmem:[%s466] sm:$0xff]
        %v468 = vld [vmem:[%s466 + $0x8] sm:$0xff]
        %469 = vrot.lane.b32.xlu0 %v288, 124
        %v470 = vpop.permute.xlu0 %469
        %471 = vrot.lane.b32.xlu0 %v289, 124
        %v472 = vpop.permute.xlu0 %471
        %vm473 = vcmask 1014784
        %v474 = vsel %vm473, %v470, %v472
        %v477 = vsel %vm286, %v467, 0
        %v480 = vsel %vm286, %v468, 0
        %482 = vmatprep.subr.mxu0 0.0
        %483 = vmatpush1.msra.mxu0 %v474
        %484 = vmatprep.subr.mxu0 0.0
        %485 = vmatpush1.msra.mxu0 0.0
        %486 = vmatprep.subr.mxu0 0.0
        %487 = vmatpush1.msra.mxu0 0.0
        %488 = vmatprep.subr.mxu0 0.0
        %489 = vmatpush1.msra.mxu0 0.0
        %490 = vmatprep.subr.mxu0 0.0
        %491 = vmatpush1.msra.mxu0 0.0
        %492 = vmatprep.subr.mxu0 0.0
        %493 = vmatpush1.msra.mxu0 0.0
        %494 = vmatprep.subr.mxu0 0.0
        %495 = vmatpush1.msra.mxu0 0.0
        %496 = vmatprep.subr.mxu0 0.0
        %497 = vmatpush1.msra.mxu0 0.0
        %498 = vmatprep.subr.mxu0 0.0
        %499 = vmatpush1.msra.mxu0 0.0
        %500 = vmatprep.subr.mxu0 0.0
        %501 = vmatpush1.msra.mxu0 0.0
        %502 = vmatprep.subr.mxu0 0.0
        %503 = vmatpush1.msra.mxu0 0.0
        %504 = vmatprep.subr.mxu0 0.0
        %505 = vmatpush1.msra.mxu0 0.0
        %506 = vmatprep.subr.mxu0 0.0
        %507 = vmatpush1.msra.mxu0 0.0
        %508 = vmatprep.subr.mxu0 0.0
        %509 = vmatpush1.msra.mxu0 0.0
        %510 = vmatprep.subr.mxu0 0.0
        %511 = vmatpush1.msra.mxu0 0.0
        %512 = vmatprep.subr.mxu0 0.0
        %513 = vmatpush1.msra.mxu0 0.0
        %514 = vmatprep.subr.mxu0 0.0
        %515 = vmatpush1.msra.mxu0 0.0
        %516 = vmatprep.subr.mxu0 0.0
        %517 = vmatpush1.msra.mxu0 0.0
        %518 = vmatprep.subr.mxu0 0.0
        %519 = vmatpush1.msra.mxu0 0.0
        %520 = vmatprep.subr.mxu0 0.0
        %521 = vmatpush1.msra.mxu0 0.0
        %522 = vmatprep.subr.mxu0 0.0
        %523 = vmatpush1.msra.mxu0 0.0
        %524 = vmatprep.subr.mxu0 0.0
        %525 = vmatpush1.msra.mxu0 0.0
        %526 = vmatprep.subr.mxu0 0.0
        %527 = vmatpush1.msra.mxu0 0.0
        %528 = vmatprep.subr.mxu0 0.0
        %529 = vmatpush1.msra.mxu0 0.0
        %530 = vmatprep.subr.mxu0 0.0
        %531 = vmatpush1.msra.mxu0 0.0
        %532 = vmatprep.subr.mxu0 0.0
        %533 = vmatpush1.msra.mxu0 0.0
        %534 = vmatprep.subr.mxu0 0.0
        %535 = vmatpush1.msra.mxu0 0.0
        %536 = vmatprep.subr.mxu0 0.0
        %537 = vmatpush1.msra.mxu0 0.0
        %538 = vmatprep.subr.mxu0 0.0
        %539 = vmatpush1.msra.mxu0 0.0
        %540 = vmatprep.subr.mxu0 0.0
        %541 = vmatpush1.msra.mxu0 0.0
        %542 = vmatprep.subr.mxu0 0.0
        %543 = vmatpush1.msra.mxu0 0.0
        %544 = vmatprep.subr.mxu0 0.0
        %545 = vmatpush1.msra.mxu0 0.0
        %546 = vmatprep.mubr.f32.mxu0 0.0
        %547 = vmatmul.mubr.f32.gmra.mrb[0].mxu0 %v477
        %v548 = vpop.f32.mrb[0].mxu0
        %v549 = vadd.f32 0.0, %v548
        %v550 = vpop.f32.mrb[0].mxu0
        %551 = vmatprep.mubr.f32.mxu0 0.0
        %552 = vmatmul.mubr.f32.gmra.mrb[0].mxu0 %v480
        %v553 = vpop.f32.mrb[0].mxu0
        %v554 = vadd.f32 0.0, %v553
        %v555 = vpop.f32.mrb[0].mxu0
        %556 = vdwg.mxu0
        %v557 = vadd.f32 %v458, %v549
        %v558 = vadd.f32 %v463, %v554
        %s559 = scalar_lea.vmem %s1, 48
        %v560 = vld [vmem:[%s559] sm:$0xff]
        %v561 = vld [vmem:[%s559 + $0x8] sm:$0xff]
        %562 = vrot.lane.b32.xlu0 %v288, 122
        %v563 = vpop.permute.xlu0 %562
        %564 = vrot.lane.b32.xlu0 %v289, 122
        %v565 = vpop.permute.xlu0 %564
        %vm566 = vcmask 998400
        %v567 = vsel %vm566, %v563, %v565
        %v570 = vsel %vm286, %v560, 0
        %v573 = vsel %vm286, %v561, 0
        %575 = vmatprep.subr.mxu0 0.0
        %576 = vmatpush1.msra.mxu0 %v567
        %577 = vmatprep.subr.mxu0 0.0
        %578 = vmatpush1.msra.mxu0 0.0
        %579 = vmatprep.subr.mxu0 0.0
        %580 = vmatpush1.msra.mxu0 0.0
        %581 = vmatprep.subr.mxu0 0.0
        %582 = vmatpush1.msra.mxu0 0.0
        %583 = vmatprep.subr.mxu0 0.0
        %584 = vmatpush1.msra.mxu0 0.0
        %585 = vmatprep.subr.mxu0 0.0
        %586 = vmatpush1.msra.mxu0 0.0
        %587 = vmatprep.subr.mxu0 0.0
        %588 = vmatpush1.msra.mxu0 0.0
        %589 = vmatprep.subr.mxu0 0.0
        %590 = vmatpush1.msra.mxu0 0.0
        %591 = vmatprep.subr.mxu0 0.0
        %592 = vmatpush1.msra.mxu0 0.0
        %593 = vmatprep.subr.mxu0 0.0
        %594 = vmatpush1.msra.mxu0 0.0
        %595 = vmatprep.subr.mxu0 0.0
        %596 = vmatpush1.msra.mxu0 0.0
        %597 = vmatprep.subr.mxu0 0.0
        %598 = vmatpush1.msra.mxu0 0.0
        %599 = vmatprep.subr.mxu0 0.0
        %600 = vmatpush1.msra.mxu0 0.0
        %601 = vmatprep.subr.mxu0 0.0
        %602 = vmatpush1.msra.mxu0 0.0
        %603 = vmatprep.subr.mxu0 0.0
        %604 = vmatpush1.msra.mxu0 0.0
        %605 = vmatprep.subr.mxu0 0.0
        %606 = vmatpush1.msra.mxu0 0.0
        %607 = vmatprep.subr.mxu0 0.0
        %608 = vmatpush1.msra.mxu0 0.0
        %609 = vmatprep.subr.mxu0 0.0
        %610 = vmatpush1.msra.mxu0 0.0
        %611 = vmatprep.subr.mxu0 0.0
        %612 = vmatpush1.msra.mxu0 0.0
        %613 = vmatprep.subr.mxu0 0.0
        %614 = vmatpush1.msra.mxu0 0.0
        %615 = vmatprep.subr.mxu0 0.0
        %616 = vmatpush1.msra.mxu0 0.0
        %617 = vmatprep.subr.mxu0 0.0
        %618 = vmatpush1.msra.mxu0 0.0
        %619 = vmatprep.subr.mxu0 0.0
        %620 = vmatpush1.msra.mxu0 0.0
        %621 = vmatprep.subr.mxu0 0.0
        %622 = vmatpush1.msra.mxu0 0.0
        %623 = vmatprep.subr.mxu0 0.0
        %624 = vmatpush1.msra.mxu0 0.0
        %625 = vmatprep.subr.mxu0 0.0
        %626 = vmatpush1.msra.mxu0 0.0
        %627 = vmatprep.subr.mxu0 0.0
        %628 = vmatpush1.msra.mxu0 0.0
        %629 = vmatprep.subr.mxu0 0.0
        %630 = vmatpush1.msra.mxu0 0.0
        %631 = vmatprep.subr.mxu0 0.0
        %632 = vmatpush1.msra.mxu0 0.0
        %633 = vmatprep.subr.mxu0 0.0
        %634 = vmatpush1.msra.mxu0 0.0
        %635 = vmatprep.subr.mxu0 0.0
        %636 = vmatpush1.msra.mxu0 0.0
        %637 = vmatprep.subr.mxu0 0.0
        %638 = vmatpush1.msra.mxu0 0.0
        %639 = vmatprep.mubr.f32.mxu0 0.0
        %640 = vmatmul.mubr.f32.gmra.mrb[0].mxu0 %v570
        %v641 = vpop.f32.mrb[0].mxu0
        %v642 = vadd.f32 0.0, %v641
        %v643 = vpop.f32.mrb[0].mxu0
        %644 = vmatprep.mubr.f32.mxu0 0.0
        %645 = vmatmul.mubr.f32.gmra.mrb[0].mxu0 %v573
        %v646 = vpop.f32.mrb[0].mxu0
        %v647 = vadd.f32 0.0, %v646
        %v648 = vpop.f32.mrb[0].mxu0
        %649 = vdwg.mxu0
        %v650 = vadd.f32 %v557, %v642
        %v651 = vadd.f32 %v558, %v647
        %s652 = scalar_lea.vmem %s1, 64
        %v653 = vld [vmem:[%s652] sm:$0xff]
        %v654 = vld [vmem:[%s652 + $0x8] sm:$0xff]
        %655 = vrot.lane.b32.xlu0 %v288, 120
        %v656 = vpop.permute.xlu0 %655
        %657 = vrot.lane.b32.xlu0 %v289, 120
        %v658 = vpop.permute.xlu0 %657
        %vm659 = vcmask 982016
        %v660 = vsel %vm659, %v656, %v658
        %v663 = vsel %vm286, %v653, 0
        %v666 = vsel %vm286, %v654, 0
        %668 = vmatprep.subr.mxu0 0.0
        %669 = vmatpush1.msra.mxu0 %v660
        %670 = vmatprep.subr.mxu0 0.0
        %671 = vmatpush1.msra.mxu0 0.0
        %672 = vmatprep.subr.mxu0 0.0
        %673 = vmatpush1.msra.mxu0 0.0
        %674 = vmatprep.subr.mxu0 0.0
        %675 = vmatpush1.msra.mxu0 0.0
        %676 = vmatprep.subr.mxu0 0.0
        %677 = vmatpush1.msra.mxu0 0.0
        %678 = vmatprep.subr.mxu0 0.0
        %679 = vmatpush1.msra.mxu0 0.0
        %680 = vmatprep.subr.mxu0 0.0
        %681 = vmatpush1.msra.mxu0 0.0
        %682 = vmatprep.subr.mxu0 0.0
        %683 = vmatpush1.msra.mxu0 0.0
        %684 = vmatprep.subr.mxu0 0.0
        %685 = vmatpush1.msra.mxu0 0.0
        %686 = vmatprep.subr.mxu0 0.0
        %687 = vmatpush1.msra.mxu0 0.0
        %688 = vmatprep.subr.mxu0 0.0
        %689 = vmatpush1.msra.mxu0 0.0
        %690 = vmatprep.subr.mxu0 0.0
        %691 = vmatpush1.msra.mxu0 0.0
        %692 = vmatprep.subr.mxu0 0.0
        %693 = vmatpush1.msra.mxu0 0.0
        %694 = vmatprep.subr.mxu0 0.0
        %695 = vmatpush1.msra.mxu0 0.0
        %696 = vmatprep.subr.mxu0 0.0
        %697 = vmatpush1.msra.mxu0 0.0
        %698 = vmatprep.subr.mxu0 0.0
        %699 = vmatpush1.msra.mxu0 0.0
        %700 = vmatprep.subr.mxu0 0.0
        %701 = vmatpush1.msra.mxu0 0.0
        %702 = vmatprep.subr.mxu0 0.0
        %703 = vmatpush1.msra.mxu0 0.0
        %704 = vmatprep.subr.mxu0 0.0
        %705 = vmatpush1.msra.mxu0 0.0
        %706 = vmatprep.subr.mxu0 0.0
        %707 = vmatpush1.msra.mxu0 0.0
        %708 = vmatprep.subr.mxu0 0.0
        %709 = vmatpush1.msra.mxu0 0.0
        %710 = vmatprep.subr.mxu0 0.0
        %711 = vmatpush1.msra.mxu0 0.0
        %712 = vmatprep.subr.mxu0 0.0
        %713 = vmatpush1.msra.mxu0 0.0
        %714 = vmatprep.subr.mxu0 0.0
        %715 = vmatpush1.msra.mxu0 0.0
        %716 = vmatprep.subr.mxu0 0.0
        %717 = vmatpush1.msra.mxu0 0.0
        %718 = vmatprep.subr.mxu0 0.0
        %719 = vmatpush1.msra.mxu0 0.0
        %720 = vmatprep.subr.mxu0 0.0
        %721 = vmatpush1.msra.mxu0 0.0
        %722 = vmatprep.subr.mxu0 0.0
        %723 = vmatpush1.msra.mxu0 0.0
        %724 = vmatprep.subr.mxu0 0.0
        %725 = vmatpush1.msra.mxu0 0.0
        %726 = vmatprep.subr.mxu0 0.0
        %727 = vmatpush1.msra.mxu0 0.0
        %728 = vmatprep.subr.mxu0 0.0
        %729 = vmatpush1.msra.mxu0 0.0
        %730 = vmatprep.subr.mxu0 0.0
        %731 = vmatpush1.msra.mxu0 0.0
        %732 = vmatprep.mubr.f32.mxu0 0.0
        %733 = vmatmul.mubr.f32.gmra.mrb[0].mxu0 %v663
        %v734 = vpop.f32.mrb[0].mxu0
        %v735 = vadd.f32 0.0, %v734
        %v736 = vpop.f32.mrb[0].mxu0
        %737 = vmatprep.mubr.f32.mxu0 0.0
        %738 = vmatmul.mubr.f32.gmra.mrb[0].mxu0 %v666
        %v739 = vpop.f32.mrb[0].mxu0
        %v740 = vadd.f32 0.0, %v739
        %v741 = vpop.f32.mrb[0].mxu0
        %742 = vdwg.mxu0
        %v743 = vadd.f32 %v650, %v735
        %v744 = vadd.f32 %v651, %v740
        %s745 = scalar_lea.vmem %s1, 80
        %v746 = vld [vmem:[%s745] sm:$0xff]
        %v747 = vld [vmem:[%s745 + $0x8] sm:$0xff]
        %748 = vrot.lane.b32.xlu0 %v288, 118
        %v749 = vpop.permute.xlu0 %748
        %750 = vrot.lane.b32.xlu0 %v289, 118
        %v751 = vpop.permute.xlu0 %750
        %vm752 = vcmask 965632
        %v753 = vsel %vm752, %v749, %v751
        %v756 = vsel %vm286, %v746, 0
        %v759 = vsel %vm286, %v747, 0
        %761 = vmatprep.subr.mxu0 0.0
        %762 = vmatpush1.msra.mxu0 %v753
        %763 = vmatprep.subr.mxu0 0.0
        %764 = vmatpush1.msra.mxu0 0.0
        %765 = vmatprep.subr.mxu0 0.0
        %766 = vmatpush1.msra.mxu0 0.0
        %767 = vmatprep.subr.mxu0 0.0
        %768 = vmatpush1.msra.mxu0 0.0
        %769 = vmatprep.subr.mxu0 0.0
        %770 = vmatpush1.msra.mxu0 0.0
        %771 = vmatprep.subr.mxu0 0.0
        %772 = vmatpush1.msra.mxu0 0.0
        %773 = vmatprep.subr.mxu0 0.0
        %774 = vmatpush1.msra.mxu0 0.0
        %775 = vmatprep.subr.mxu0 0.0
        %776 = vmatpush1.msra.mxu0 0.0
        %777 = vmatprep.subr.mxu0 0.0
        %778 = vmatpush1.msra.mxu0 0.0
        %779 = vmatprep.subr.mxu0 0.0
        %780 = vmatpush1.msra.mxu0 0.0
        %781 = vmatprep.subr.mxu0 0.0
        %782 = vmatpush1.msra.mxu0 0.0
        %783 = vmatprep.subr.mxu0 0.0
        %784 = vmatpush1.msra.mxu0 0.0
        %785 = vmatprep.subr.mxu0 0.0
        %786 = vmatpush1.msra.mxu0 0.0
        %787 = vmatprep.subr.mxu0 0.0
        %788 = vmatpush1.msra.mxu0 0.0
        %789 = vmatprep.subr.mxu0 0.0
        %790 = vmatpush1.msra.mxu0 0.0
        %791 = vmatprep.subr.mxu0 0.0
        %792 = vmatpush1.msra.mxu0 0.0
        %793 = vmatprep.subr.mxu0 0.0
        %794 = vmatpush1.msra.mxu0 0.0
        %795 = vmatprep.subr.mxu0 0.0
        %796 = vmatpush1.msra.mxu0 0.0
        %797 = vmatprep.subr.mxu0 0.0
        %798 = vmatpush1.msra.mxu0 0.0
        %799 = vmatprep.subr.mxu0 0.0
        %800 = vmatpush1.msra.mxu0 0.0
        %801 = vmatprep.subr.mxu0 0.0
        %802 = vmatpush1.msra.mxu0 0.0
        %803 = vmatprep.subr.mxu0 0.0
        %804 = vmatpush1.msra.mxu0 0.0
        %805 = vmatprep.subr.mxu0 0.0
        %806 = vmatpush1.msra.mxu0 0.0
        %807 = vmatprep.subr.mxu0 0.0
        %808 = vmatpush1.msra.mxu0 0.0
        %809 = vmatprep.subr.mxu0 0.0
        %810 = vmatpush1.msra.mxu0 0.0
        %811 = vmatprep.subr.mxu0 0.0
        %812 = vmatpush1.msra.mxu0 0.0
        %813 = vmatprep.subr.mxu0 0.0
        %814 = vmatpush1.msra.mxu0 0.0
        %815 = vmatprep.subr.mxu0 0.0
        %816 = vmatpush1.msra.mxu0 0.0
        %817 = vmatprep.subr.mxu0 0.0
        %818 = vmatpush1.msra.mxu0 0.0
        %819 = vmatprep.subr.mxu0 0.0
        %820 = vmatpush1.msra.mxu0 0.0
        %821 = vmatprep.subr.mxu0 0.0
        %822 = vmatpush1.msra.mxu0 0.0
        %823 = vmatprep.subr.mxu0 0.0
        %824 = vmatpush1.msra.mxu0 0.0
        %825 = vmatprep.mubr.f32.mxu0 0.0
        %826 = vmatmul.mubr.f32.gmra.mrb[0].mxu0 %v756
        %v827 = vpop.f32.mrb[0].mxu0
        %v828 = vadd.f32 0.0, %v827
        %v829 = vpop.f32.mrb[0].mxu0
        %830 = vmatprep.mubr.f32.mxu0 0.0
        %831 = vmatmul.mubr.f32.gmra.mrb[0].mxu0 %v759
        %v832 = vpop.f32.mrb[0].mxu0
        %v833 = vadd.f32 0.0, %v832
        %v834 = vpop.f32.mrb[0].mxu0
        %835 = vdwg.mxu0
        %v836 = vadd.f32 %v743, %v828
        %v837 = vadd.f32 %v744, %v833
        %s838 = scalar_lea.vmem %s1, 96
        %v839 = vld [vmem:[%s838] sm:$0xff]
        %v840 = vld [vmem:[%s838 + $0x8] sm:$0xff]
        %841 = vrot.lane.b32.xlu0 %v288, 116
        %v842 = vpop.permute.xlu0 %841
        %843 = vrot.lane.b32.xlu0 %v289, 116
        %v844 = vpop.permute.xlu0 %843
        %vm845 = vcmask 949248
        %v846 = vsel %vm845, %v842, %v844
        %v849 = vsel %vm286, %v839, 0
        %v852 = vsel %vm286, %v840, 0
        %854 = vmatprep.subr.mxu0 0.0
        %855 = vmatpush1.msra.mxu0 %v846
        %856 = vmatprep.subr.mxu0 0.0
        %857 = vmatpush1.msra.mxu0 0.0
        %858 = vmatprep.subr.mxu0 0.0
        %859 = vmatpush1.msra.mxu0 0.0
        %860 = vmatprep.subr.mxu0 0.0
        %861 = vmatpush1.msra.mxu0 0.0
        %862 = vmatprep.subr.mxu0 0.0
        %863 = vmatpush1.msra.mxu0 0.0
        %864 = vmatprep.subr.mxu0 0.0
        %865 = vmatpush1.msra.mxu0 0.0
        %866 = vmatprep.subr.mxu0 0.0
        %867 = vmatpush1.msra.mxu0 0.0
        %868 = vmatprep.subr.mxu0 0.0
        %869 = vmatpush1.msra.mxu0 0.0
        %870 = vmatprep.subr.mxu0 0.0
        %871 = vmatpush1.msra.mxu0 0.0
        %872 = vmatprep.subr.mxu0 0.0
        %873 = vmatpush1.msra.mxu0 0.0
        %874 = vmatprep.subr.mxu0 0.0
        %875 = vmatpush1.msra.mxu0 0.0
        %876 = vmatprep.subr.mxu0 0.0
        %877 = vmatpush1.msra.mxu0 0.0
        %878 = vmatprep.subr.mxu0 0.0
        %879 = vmatpush1.msra.mxu0 0.0
        %880 = vmatprep.subr.mxu0 0.0
        %881 = vmatpush1.msra.mxu0 0.0
        %882 = vmatprep.subr.mxu0 0.0
        %883 = vmatpush1.msra.mxu0 0.0
        %884 = vmatprep.subr.mxu0 0.0
        %885 = vmatpush1.msra.mxu0 0.0
        %886 = vmatprep.subr.mxu0 0.0
        %887 = vmatpush1.msra.mxu0 0.0
        %888 = vmatprep.subr.mxu0 0.0
        %889 = vmatpush1.msra.mxu0 0.0
        %890 = vmatprep.subr.mxu0 0.0
        %891 = vmatpush1.msra.mxu0 0.0
        %892 = vmatprep.subr.mxu0 0.0
        %893 = vmatpush1.msra.mxu0 0.0
        %894 = vmatprep.subr.mxu0 0.0
        %895 = vmatpush1.msra.mxu0 0.0
        %896 = vmatprep.subr.mxu0 0.0
        %897 = vmatpush1.msra.mxu0 0.0
        %898 = vmatprep.subr.mxu0 0.0
        %899 = vmatpush1.msra.mxu0 0.0
        %900 = vmatprep.subr.mxu0 0.0
        %901 = vmatpush1.msra.mxu0 0.0
        %902 = vmatprep.subr.mxu0 0.0
        %903 = vmatpush1.msra.mxu0 0.0
        %904 = vmatprep.subr.mxu0 0.0
        %905 = vmatpush1.msra.mxu0 0.0
        %906 = vmatprep.subr.mxu0 0.0
        %907 = vmatpush1.msra.mxu0 0.0
        %908 = vmatprep.subr.mxu0 0.0
        %909 = vmatpush1.msra.mxu0 0.0
        %910 = vmatprep.subr.mxu0 0.0
        %911 = vmatpush1.msra.mxu0 0.0
        %912 = vmatprep.subr.mxu0 0.0
        %913 = vmatpush1.msra.mxu0 0.0
        %914 = vmatprep.subr.mxu0 0.0
        %915 = vmatpush1.msra.mxu0 0.0
        %916 = vmatprep.subr.mxu0 0.0
        %917 = vmatpush1.msra.mxu0 0.0
        %918 = vmatprep.mubr.f32.mxu0 0.0
        %919 = vmatmul.mubr.f32.gmra.mrb[0].mxu0 %v849
        %v920 = vpop.f32.mrb[0].mxu0
        %v921 = vadd.f32 0.0, %v920
        %v922 = vpop.f32.mrb[0].mxu0
        %923 = vmatprep.mubr.f32.mxu0 0.0
        %924 = vmatmul.mubr.f32.gmra.mrb[0].mxu0 %v852
        %v925 = vpop.f32.mrb[0].mxu0
        %v926 = vadd.f32 0.0, %v925
        %v927 = vpop.f32.mrb[0].mxu0
        %928 = vdwg.mxu0
        %v929 = vadd.f32 %v836, %v921
        %v930 = vadd.f32 %v837, %v926
        %s931 = scalar_lea.vmem %s1, 112
        %v932 = vld [vmem:[%s931] sm:$0xff]
        %v933 = vld [vmem:[%s931 + $0x8] sm:$0xff]
        %934 = vrot.lane.b32.xlu0 %v288, 114
        %v935 = vpop.permute.xlu0 %934
        %936 = vrot.lane.b32.xlu0 %v289, 114
        %v937 = vpop.permute.xlu0 %936
        %vm938 = vcmask 932864
        %v939 = vsel %vm938, %v935, %v937
        %v942 = vsel %vm286, %v932, 0
        %v945 = vsel %vm286, %v933, 0
        %947 = vmatprep.subr.mxu0 0.0
        %948 = vmatpush1.msra.mxu0 %v939
        %949 = vmatprep.subr.mxu0 0.0
        %950 = vmatpush1.msra.mxu0 0.0
        %951 = vmatprep.subr.mxu0 0.0
        %952 = vmatpush1.msra.mxu0 0.0
        %953 = vmatprep.subr.mxu0 0.0
        %954 = vmatpush1.msra.mxu0 0.0
        %955 = vmatprep.subr.mxu0 0.0
        %956 = vmatpush1.msra.mxu0 0.0
        %957 = vmatprep.subr.mxu0 0.0
        %958 = vmatpush1.msra.mxu0 0.0
        %959 = vmatprep.subr.mxu0 0.0
        %960 = vmatpush1.msra.mxu0 0.0
        %961 = vmatprep.subr.mxu0 0.0
        %962 = vmatpush1.msra.mxu0 0.0
        %963 = vmatprep.subr.mxu0 0.0
        %964 = vmatpush1.msra.mxu0 0.0
        %965 = vmatprep.subr.mxu0 0.0
        %966 = vmatpush1.msra.mxu0 0.0
        %967 = vmatprep.subr.mxu0 0.0
        %968 = vmatpush1.msra.mxu0 0.0
        %969 = vmatprep.subr.mxu0 0.0
        %970 = vmatpush1.msra.mxu0 0.0
        %971 = vmatprep.subr.mxu0 0.0
        %972 = vmatpush1.msra.mxu0 0.0
        %973 = vmatprep.subr.mxu0 0.0
        %974 = vmatpush1.msra.mxu0 0.0
        %975 = vmatprep.subr.mxu0 0.0
        %976 = vmatpush1.msra.mxu0 0.0
        %977 = vmatprep.subr.mxu0 0.0
        %978 = vmatpush1.msra.mxu0 0.0
        %979 = vmatprep.subr.mxu0 0.0
        %980 = vmatpush1.msra.mxu0 0.0
        %981 = vmatprep.subr.mxu0 0.0
        %982 = vmatpush1.msra.mxu0 0.0
        %983 = vmatprep.subr.mxu0 0.0
        %984 = vmatpush1.msra.mxu0 0.0
        %985 = vmatprep.subr.mxu0 0.0
        %986 = vmatpush1.msra.mxu0 0.0
        %987 = vmatprep.subr.mxu0 0.0
        %988 = vmatpush1.msra.mxu0 0.0
        %989 = vmatprep.subr.mxu0 0.0
        %990 = vmatpush1.msra.mxu0 0.0
        %991 = vmatprep.subr.mxu0 0.0
        %992 = vmatpush1.msra.mxu0 0.0
        %993 = vmatprep.subr.mxu0 0.0
        %994 = vmatpush1.msra.mxu0 0.0
        %995 = vmatprep.subr.mxu0 0.0
        %996 = vmatpush1.msra.mxu0 0.0
        %997 = vmatprep.subr.mxu0 0.0
        %998 = vmatpush1.msra.mxu0 0.0
        %999 = vmatprep.subr.mxu0 0.0
        %1000 = vmatpush1.msra.mxu0 0.0
        %1001 = vmatprep.subr.mxu0 0.0
        %1002 = vmatpush1.msra.mxu0 0.0
        %1003 = vmatprep.subr.mxu0 0.0
        %1004 = vmatpush1.msra.mxu0 0.0
        %1005 = vmatprep.subr.mxu0 0.0
        %1006 = vmatpush1.msra.mxu0 0.0
        %1007 = vmatprep.subr.mxu0 0.0
        %1008 = vmatpush1.msra.mxu0 0.0
        %1009 = vmatprep.subr.mxu0 0.0
        %1010 = vmatpush1.msra.mxu0 0.0
        %1011 = vmatprep.mubr.f32.mxu0 0.0
        %1012 = vmatmul.mubr.f32.gmra.mrb[0].mxu0 %v942
        %v1013 = vpop.f32.mrb[0].mxu0
        %v1014 = vadd.f32 0.0, %v1013
        %v1015 = vpop.f32.mrb[0].mxu0
        %1016 = vmatprep.mubr.f32.mxu0 0.0
        %1017 = vmatmul.mubr.f32.gmra.mrb[0].mxu0 %v945
        %v1018 = vpop.f32.mrb[0].mxu0
        %v1019 = vadd.f32 0.0, %v1018
        %v1020 = vpop.f32.mrb[0].mxu0
        %1021 = vdwg.mxu0
        %v1022 = vadd.f32 %v929, %v1014
        %v1023 = vadd.f32 %v930, %v1019
        %s1024 = scalar_lea.vmem %s1, 128
        %v1025 = vld [vmem:[%s1024] sm:$0xff]
        %v1026 = vld [vmem:[%s1024 + $0x8] sm:$0xff]
        %1027 = vrot.lane.b32.xlu0 %v288, 112
        %v1028 = vpop.permute.xlu0 %1027
        %1029 = vrot.lane.b32.xlu0 %v289, 112
        %v1030 = vpop.permute.xlu0 %1029
        %vm1031 = vcmask 916480
        %v1032 = vsel %vm1031, %v1028, %v1030
        %v1035 = vsel %vm286, %v1025, 0
        %v1038 = vsel %vm286, %v1026, 0
        %1040 = vmatprep.subr.mxu0 0.0
        %1041 = vmatpush1.msra.mxu0 %v1032
        %1042 = vmatprep.subr.mxu0 0.0
        %1043 = vmatpush1.msra.mxu0 0.0
        %1044 = vmatprep.subr.mxu0 0.0
        %1045 = vmatpush1.msra.mxu0 0.0
        %1046 = vmatprep.subr.mxu0 0.0
        %1047 = vmatpush1.msra.mxu0 0.0
        %1048 = vmatprep.subr.mxu0 0.0
        %1049 = vmatpush1.msra.mxu0 0.0
        %1050 = vmatprep.subr.mxu0 0.0
        %1051 = vmatpush1.msra.mxu0 0.0
        %1052 = vmatprep.subr.mxu0 0.0
        %1053 = vmatpush1.msra.mxu0 0.0
        %1054 = vmatprep.subr.mxu0 0.0
        %1055 = vmatpush1.msra.mxu0 0.0
        %1056 = vmatprep.subr.mxu0 0.0
        %1057 = vmatpush1.msra.mxu0 0.0
        %1058 = vmatprep.subr.mxu0 0.0
        %1059 = vmatpush1.msra.mxu0 0.0
        %1060 = vmatprep.subr.mxu0 0.0
        %1061 = vmatpush1.msra.mxu0 0.0
        %1062 = vmatprep.subr.mxu0 0.0
        %1063 = vmatpush1.msra.mxu0 0.0
        %1064 = vmatprep.subr.mxu0 0.0
        %1065 = vmatpush1.msra.mxu0 0.0
        %1066 = vmatprep.subr.mxu0 0.0
        %1067 = vmatpush1.msra.mxu0 0.0
        %1068 = vmatprep.subr.mxu0 0.0
        %1069 = vmatpush1.msra.mxu0 0.0
        %1070 = vmatprep.subr.mxu0 0.0
        %1071 = vmatpush1.msra.mxu0 0.0
        %1072 = vmatprep.subr.mxu0 0.0
        %1073 = vmatpush1.msra.mxu0 0.0
        %1074 = vmatprep.subr.mxu0 0.0
        %1075 = vmatpush1.msra.mxu0 0.0
        %1076 = vmatprep.subr.mxu0 0.0
        %1077 = vmatpush1.msra.mxu0 0.0
        %1078 = vmatprep.subr.mxu0 0.0
        %1079 = vmatpush1.msra.mxu0 0.0
        %1080 = vmatprep.subr.mxu0 0.0
        %1081 = vmatpush1.msra.mxu0 0.0
        %1082 = vmatprep.subr.mxu0 0.0
        %1083 = vmatpush1.msra.mxu0 0.0
        %1084 = vmatprep.subr.mxu0 0.0
        %1085 = vmatpush1.msra.mxu0 0.0
        %1086 = vmatprep.subr.mxu0 0.0
        %1087 = vmatpush1.msra.mxu0 0.0
        %1088 = vmatprep.subr.mxu0 0.0
        %1089 = vmatpush1.msra.mxu0 0.0
        %1090 = vmatprep.subr.mxu0 0.0
        %1091 = vmatpush1.msra.mxu0 0.0
        %1092 = vmatprep.subr.mxu0 0.0
        %1093 = vmatpush1.msra.mxu0 0.0
        %1094 = vmatprep.subr.mxu0 0.0
        %1095 = vmatpush1.msra.mxu0 0.0
        %1096 = vmatprep.subr.mxu0 0.0
        %1097 = vmatpush1.msra.mxu0 0.0
        %1098 = vmatprep.subr.mxu0 0.0
        %1099 = vmatpush1.msra.mxu0 0.0
        %1100 = vmatprep.subr.mxu0 0.0
        %1101 = vmatpush1.msra.mxu0 0.0
        %1102 = vmatprep.subr.mxu0 0.0
        %1103 = vmatpush1.msra.mxu0 0.0
        %1104 = vmatprep.mubr.f32.mxu0 0.0
        %1105 = vmatmul.mubr.f32.gmra.mrb[0].mxu0 %v1035
        %v1106 = vpop.f32.mrb[0].mxu0
        %v1107 = vadd.f32 0.0, %v1106
        %v1108 = vpop.f32.mrb[0].mxu0
        %1109 = vmatprep.mubr.f32.mxu0 0.0
        %1110 = vmatmul.mubr.f32.gmra.mrb[0].mxu0 %v1038
        %v1111 = vpop.f32.mrb[0].mxu0
        %v1112 = vadd.f32 0.0, %v1111
        %v1113 = vpop.f32.mrb[0].mxu0
        %1114 = vdwg.mxu0
        %v1115 = vadd.f32 %v1022, %v1107
        %v1116 = vadd.f32 %v1023, %v1112
        %1118 = vset.pattern.permute.xlu0 0
        %1119 = vperm.xlu0 %1118, %v275
        %v1120 = vpop.permute.xlu0 %1119
        %1123 = vset.pattern.permute.xlu0 0
        %1124 = vperm.xlu0 %1123, %v276
        %v1125 = vpop.permute.xlu0 %1124
        %v1127 = vadd.f32 %v1115, %v1120
        %v1128 = vadd.f32 %v1116, %v1125
        %v1129 = vmax.f32 %v1127, 0.0
        %v1130 = vmax.f32 %v1128, 0.0
        %v1131 = vld [vmem:[%s5] sm:$0xff]
        %v1132 = vld [vmem:[%s5 + $0x8] sm:$0xff]
        %v1133 = vld [vmem:[%s6] sm:$0xff]
        %v1134 = vld [vmem:[%s6 + $0x8] sm:$0xff]
        %1136 = vset.pattern.permute.xlu0 0
        %1137 = vperm.xlu0 %1136, %v1133
        %v1138 = vpop.permute.xlu0 %1137
        %1141 = vset.pattern.permute.xlu0 0
        %1142 = vperm.xlu0 %1141, %v1134
        %v1143 = vpop.permute.xlu0 %1142
        %v1146 = vsel %vm286, %v1131, 0
        %v1149 = vsel %vm286, %v1132, 0
        %1151 = vmatprep.subr.mxu0 0.0
        %1152 = vmatpush1.msra.mxu0 %v274
        %1153 = vmatprep.subr.mxu0 0.0
        %1154 = vmatpush1.msra.mxu0 0.0
        %1155 = vmatprep.subr.mxu0 0.0
        %1156 = vmatpush1.msra.mxu0 0.0
        %1157 = vmatprep.subr.mxu0 0.0
        %1158 = vmatpush1.msra.mxu0 0.0
        %1159 = vmatprep.subr.mxu0 0.0
        %1160 = vmatpush1.msra.mxu0 0.0
        %1161 = vmatprep.subr.mxu0 0.0
        %1162 = vmatpush1.msra.mxu0 0.0
        %1163 = vmatprep.subr.mxu0 0.0
        %1164 = vmatpush1.msra.mxu0 0.0
        %1165 = vmatprep.subr.mxu0 0.0
        %1166 = vmatpush1.msra.mxu0 0.0
        %1167 = vmatprep.subr.mxu0 0.0
        %1168 = vmatpush1.msra.mxu0 0.0
        %1169 = vmatprep.subr.mxu0 0.0
        %1170 = vmatpush1.msra.mxu0 0.0
        %1171 = vmatprep.subr.mxu0 0.0
        %1172 = vmatpush1.msra.mxu0 0.0
        %1173 = vmatprep.subr.mxu0 0.0
        %1174 = vmatpush1.msra.mxu0 0.0
        %1175 = vmatprep.subr.mxu0 0.0
        %1176 = vmatpush1.msra.mxu0 0.0
        %1177 = vmatprep.subr.mxu0 0.0
        %1178 = vmatpush1.msra.mxu0 0.0
        %1179 = vmatprep.subr.mxu0 0.0
        %1180 = vmatpush1.msra.mxu0 0.0
        %1181 = vmatprep.subr.mxu0 0.0
        %1182 = vmatpush1.msra.mxu0 0.0
        %1183 = vmatprep.subr.mxu0 0.0
        %1184 = vmatpush1.msra.mxu0 0.0
        %1185 = vmatprep.subr.mxu0 0.0
        %1186 = vmatpush1.msra.mxu0 0.0
        %1187 = vmatprep.subr.mxu0 0.0
        %1188 = vmatpush1.msra.mxu0 0.0
        %1189 = vmatprep.subr.mxu0 0.0
        %1190 = vmatpush1.msra.mxu0 0.0
        %1191 = vmatprep.subr.mxu0 0.0
        %1192 = vmatpush1.msra.mxu0 0.0
        %1193 = vmatprep.subr.mxu0 0.0
        %1194 = vmatpush1.msra.mxu0 0.0
        %1195 = vmatprep.subr.mxu0 0.0
        %1196 = vmatpush1.msra.mxu0 0.0
        %1197 = vmatprep.subr.mxu0 0.0
        %1198 = vmatpush1.msra.mxu0 0.0
        %1199 = vmatprep.subr.mxu0 0.0
        %1200 = vmatpush1.msra.mxu0 0.0
        %1201 = vmatprep.subr.mxu0 0.0
        %1202 = vmatpush1.msra.mxu0 0.0
        %1203 = vmatprep.subr.mxu0 0.0
        %1204 = vmatpush1.msra.mxu0 0.0
        %1205 = vmatprep.subr.mxu0 0.0
        %1206 = vmatpush1.msra.mxu0 0.0
        %1207 = vmatprep.subr.mxu0 0.0
        %1208 = vmatpush1.msra.mxu0 0.0
        %1209 = vmatprep.subr.mxu0 0.0
        %1210 = vmatpush1.msra.mxu0 0.0
        %1211 = vmatprep.subr.mxu0 0.0
        %1212 = vmatpush1.msra.mxu0 0.0
        %1213 = vmatprep.subr.mxu0 0.0
        %1214 = vmatpush1.msra.mxu0 0.0
        %1215 = vmatprep.mubr.f32.mxu0 0.0
        %1216 = vmatmul.mubr.f32.gmra.mrb[0].mxu0 %v1146
        %v1217 = vpop.f32.mrb[0].mxu0
        %v1218 = vadd.f32 %v1138, %v1217
        %v1219 = vpop.f32.mrb[0].mxu0
        %1220 = vmatprep.mubr.f32.mxu0 0.0
        %1221 = vmatmul.mubr.f32.gmra.mrb[0].mxu0 %v1149
        %v1222 = vpop.f32.mrb[0].mxu0
        %v1223 = vadd.f32 %v1143, %v1222
        %v1224 = vpop.f32.mrb[0].mxu0
        %1225 = vdwg.mxu0
        %v1226 = vmax.f32 %v1218, 0.0
        %v1227 = vmax.f32 %v1223, 0.0
        %v1228 = vld [vmem:[%s4] sm:$0xff]
        %v1229 = vld [vmem:[%s4 + $0x8] sm:$0xff]
        %1230 = vst [vmem:[#allocation3] sm:$0xff] 0.0
        %1231 = vst.msk [vmem:[#allocation3 + $0x8] sm:$0xff] %vm278, 0.0
        %1232 = vst [vmem:[#allocation3 + $0x10] sm:$0xff] 0.0
        %1233 = vst.msk [vmem:[#allocation3 + $0x18] sm:$0xff] %vm278, 0.0
        %1236 = vrot.lane.b32.xlu0 %v1129, 8
        %v1237 = vpop.permute.xlu0 %1236
        %1238 = vrot.lane.b32.xlu0 %v1130, 8
        %v1239 = vpop.permute.xlu0 %1238
        %1242 = vst.msk [vmem:[#allocation3] sm:$0xff] %vm284, %v1237
        %1243 = vst.msk [vmem:[#allocation3 + $0x8] sm:$0xff] %vm286, %v1237
        %1244 = vst.msk [vmem:[#allocation3 + $0x10] sm:$0xff] %vm284, %v1239
        %1245 = vst.msk [vmem:[#allocation3 + $0x18] sm:$0xff] %vm286, %v1239
        %v1246 = vld [vmem:[#allocation3] sm:$0xff]
        %v1247 = vld [vmem:[#allocation3 + $0x8] sm:$0xff]
        %v1248 = vld [vmem:[#allocation3 + $0x10] sm:$0xff]
        %v1249 = vld [vmem:[#allocation3 + $0x18] sm:$0xff]
        %v1250 = vld [vmem:[%s3] sm:$0xff]
        %v1251 = vld [vmem:[%s3 + $0x8] sm:$0xff]
        %s1252 = scalar_lea.vmem %s3, 16
        %v1253 = vld [vmem:[%s1252] sm:$0xff]
        %v1254 = vld [vmem:[%s1252 + $0x8] sm:$0xff]
        %1259 = vrot.lane.b32.xlu0 %v1246, 126
        %v1260 = vpop.permute.xlu0 %1259
        %1261 = vrot.lane.b32.xlu0 %v1247, 126
        %v1262 = vpop.permute.xlu0 %1261
        %1263 = vrot.lane.b32.xlu0 %v1248, 126
        %v1264 = vpop.permute.xlu0 %1263
        %1265 = vrot.lane.b32.xlu0 %v1249, 126
        %v1266 = vpop.permute.xlu0 %1265
        %v1267 = vsel %vm301, %v1260, %v1262
        %v1268 = vsel %vm301, %v1264, %v1266
        %v1272 = vsel %vm278, %v1253, 0
        %v1275 = vsel %vm278, %v1254, 0
        %1277 = vmatprep.subr.mxu0 0.0
        %1278 = vmatpush1.msra.mxu0 %v1267
        %1279 = vmatprep.subr.mxu0 0.0
        %1280 = vmatpush1.msra.mxu0 %v1268
        %1281 = vmatprep.subr.mxu0 0.0
        %1282 = vmatpush1.msra.mxu0 0.0
        %1283 = vmatprep.subr.mxu0 0.0
        %1284 = vmatpush1.msra.mxu0 0.0
        %1285 = vmatprep.subr.mxu0 0.0
        %1286 = vmatpush1.msra.mxu0 0.0
        %1287 = vmatprep.subr.mxu0 0.0
        %1288 = vmatpush1.msra.mxu0 0.0
        %1289 = vmatprep.subr.mxu0 0.0
        %1290 = vmatpush1.msra.mxu0 0.0
        %1291 = vmatprep.subr.mxu0 0.0
        %1292 = vmatpush1.msra.mxu0 0.0
        %1293 = vmatprep.subr.mxu0 0.0
        %1294 = vmatpush1.msra.mxu0 0.0
        %1295 = vmatprep.subr.mxu0 0.0
        %1296 = vmatpush1.msra.mxu0 0.0
        %1297 = vmatprep.subr.mxu0 0.0
        %1298 = vmatpush1.msra.mxu0 0.0
        %1299 = vmatprep.subr.mxu0 0.0
        %1300 = vmatpush1.msra.mxu0 0.0
        %1301 = vmatprep.subr.mxu0 0.0
        %1302 = vmatpush1.msra.mxu0 0.0
        %1303 = vmatprep.subr.mxu0 0.0
        %1304 = vmatpush1.msra.mxu0 0.0
        %1305 = vmatprep.subr.mxu0 0.0
        %1306 = vmatpush1.msra.mxu0 0.0
        %1307 = vmatprep.subr.mxu0 0.0
        %1308 = vmatpush1.msra.mxu0 0.0
        %1309 = vmatprep.subr.mxu0 0.0
        %1310 = vmatpush1.msra.mxu0 0.0
        %1311 = vmatprep.subr.mxu0 0.0
        %1312 = vmatpush1.msra.mxu0 0.0
        %1313 = vmatprep.subr.mxu0 0.0
        %1314 = vmatpush1.msra.mxu0 0.0
        %1315 = vmatprep.subr.mxu0 0.0
        %1316 = vmatpush1.msra.mxu0 0.0
        %1317 = vmatprep.subr.mxu0 0.0
        %1318 = vmatpush1.msra.mxu0 0.0
        %1319 = vmatprep.subr.mxu0 0.0
        %1320 = vmatpush1.msra.mxu0 0.0
        %1321 = vmatprep.subr.mxu0 0.0
        %1322 = vmatpush1.msra.mxu0 0.0
        %1323 = vmatprep.subr.mxu0 0.0
        %1324 = vmatpush1.msra.mxu0 0.0
        %1325 = vmatprep.subr.mxu0 0.0
        %1326 = vmatpush1.msra.mxu0 0.0
        %1327 = vmatprep.subr.mxu0 0.0
        %1328 = vmatpush1.msra.mxu0 0.0
        %1329 = vmatprep.subr.mxu0 0.0
        %1330 = vmatpush1.msra.mxu0 0.0
        %1331 = vmatprep.subr.mxu0 0.0
        %1332 = vmatpush1.msra.mxu0 0.0
        %1333 = vmatprep.subr.mxu0 0.0
        %1334 = vmatpush1.msra.mxu0 0.0
        %1335 = vmatprep.subr.mxu0 0.0
        %1336 = vmatpush1.msra.mxu0 0.0
        %1337 = vmatprep.subr.mxu0 0.0
        %1338 = vmatpush1.msra.mxu0 0.0
        %1339 = vmatprep.subr.mxu0 0.0
        %1340 = vmatpush1.msra.mxu0 0.0
        %1341 = vmatprep.mubr.f32.mxu0 0.0
        %1342 = vmatmul.mubr.f32.gmra.mrb[0].mxu0 %v1272
        %v1343 = vpop.f32.mrb[0].mxu0
        %v1344 = vadd.f32 0.0, %v1343
        %v1345 = vpop.f32.mrb[0].mxu0
        %1346 = vmatprep.mubr.f32.mxu0 0.0
        %1347 = vmatmul.mubr.f32.gmra.mrb[0].mxu0 %v1275
        %v1348 = vpop.f32.mrb[0].mxu0
        %v1349 = vadd.f32 0.0, %v1348
        %v1350 = vpop.f32.mrb[0].mxu0
        %1351 = vdwg.mxu0
        %v1353 = vsel %vm278, %v1250, 0
        %v1356 = vsel %vm278, %v1251, 0
        %1358 = vmatprep.subr.mxu0 0.0
        %1359 = vmatpush1.msra.mxu0 %v1246
        %1360 = vmatprep.subr.mxu0 0.0
        %1361 = vmatpush1.msra.mxu0 %v1248
        %1362 = vmatprep.subr.mxu0 0.0
        %1363 = vmatpush1.msra.mxu0 0.0
        %1364 = vmatprep.subr.mxu0 0.0
        %1365 = vmatpush1.msra.mxu0 0.0
        %1366 = vmatprep.subr.mxu0 0.0
        %1367 = vmatpush1.msra.mxu0 0.0
        %1368 = vmatprep.subr.mxu0 0.0
        %1369 = vmatpush1.msra.mxu0 0.0
        %1370 = vmatprep.subr.mxu0 0.0
        %1371 = vmatpush1.msra.mxu0 0.0
        %1372 = vmatprep.subr.mxu0 0.0
        %1373 = vmatpush1.msra.mxu0 0.0
        %1374 = vmatprep.subr.mxu0 0.0
        %1375 = vmatpush1.msra.mxu0 0.0
        %1376 = vmatprep.subr.mxu0 0.0
        %1377 = vmatpush1.msra.mxu0 0.0
        %1378 = vmatprep.subr.mxu0 0.0
        %1379 = vmatpush1.msra.mxu0 0.0
        %1380 = vmatprep.subr.mxu0 0.0
        %1381 = vmatpush1.msra.mxu0 0.0
        %1382 = vmatprep.subr.mxu0 0.0
        %1383 = vmatpush1.msra.mxu0 0.0
        %1384 = vmatprep.subr.mxu0 0.0
        %1385 = vmatpush1.msra.mxu0 0.0
        %1386 = vmatprep.subr.mxu0 0.0
        %1387 = vmatpush1.msra.mxu0 0.0
        %1388 = vmatprep.subr.mxu0 0.0
        %1389 = vmatpush1.msra.mxu0 0.0
        %1390 = vmatprep.subr.mxu0 0.0
        %1391 = vmatpush1.msra.mxu0 0.0
        %1392 = vmatprep.subr.mxu0 0.0
        %1393 = vmatpush1.msra.mxu0 0.0
        %1394 = vmatprep.subr.mxu0 0.0
        %1395 = vmatpush1.msra.mxu0 0.0
        %1396 = vmatprep.subr.mxu0 0.0
        %1397 = vmatpush1.msra.mxu0 0.0
        %1398 = vmatprep.subr.mxu0 0.0
        %1399 = vmatpush1.msra.mxu0 0.0
        %1400 = vmatprep.subr.mxu0 0.0
        %1401 = vmatpush1.msra.mxu0 0.0
        %1402 = vmatprep.subr.mxu0 0.0
        %1403 = vmatpush1.msra.mxu0 0.0
        %1404 = vmatprep.subr.mxu0 0.0
        %1405 = vmatpush1.msra.mxu0 0.0
        %1406 = vmatprep.subr.mxu0 0.0
        %1407 = vmatpush1.msra.mxu0 0.0
        %1408 = vmatprep.subr.mxu0 0.0
        %1409 = vmatpush1.msra.mxu0 0.0
        %1410 = vmatprep.subr.mxu0 0.0
        %1411 = vmatpush1.msra.mxu0 0.0
        %1412 = vmatprep.subr.mxu0 0.0
        %1413 = vmatpush1.msra.mxu0 0.0
        %1414 = vmatprep.subr.mxu0 0.0
        %1415 = vmatpush1.msra.mxu0 0.0
        %1416 = vmatprep.subr.mxu0 0.0
        %1417 = vmatpush1.msra.mxu0 0.0
        %1418 = vmatprep.subr.mxu0 0.0
        %1419 = vmatpush1.msra.mxu0 0.0
        %1420 = vmatprep.subr.mxu0 0.0
        %1421 = vmatpush1.msra.mxu0 0.0
        %1422 = vmatprep.mubr.f32.mxu0 0.0
        %1423 = vmatmul.mubr.f32.gmra.mrb[0].mxu0 %v1353
        %v1424 = vpop.f32.mrb[0].mxu0
        %v1425 = vadd.f32 %v1344, %v1424
        %v1426 = vpop.f32.mrb[0].mxu0
        %1427 = vmatprep.mubr.f32.mxu0 0.0
        %1428 = vmatmul.mubr.f32.gmra.mrb[0].mxu0 %v1356
        %v1429 = vpop.f32.mrb[0].mxu0
        %v1430 = vadd.f32 %v1349, %v1429
        %v1431 = vpop.f32.mrb[0].mxu0
        %1432 = vdwg.mxu0
        %s1433 = scalar_lea.vmem %s3, 32
        %v1434 = vld [vmem:[%s1433] sm:$0xff]
        %v1435 = vld [vmem:[%s1433 + $0x8] sm:$0xff]
        %1436 = vrot.lane.b32.xlu0 %v1246, 124
        %v1437 = vpop.permute.xlu0 %1436
        %1438 = vrot.lane.b32.xlu0 %v1247, 124
        %v1439 = vpop.permute.xlu0 %1438
        %1440 = vrot.lane.b32.xlu0 %v1248, 124
        %v1441 = vpop.permute.xlu0 %1440
        %1442 = vrot.lane.b32.xlu0 %v1249, 124
        %v1443 = vpop.permute.xlu0 %1442
        %v1444 = vsel %vm473, %v1437, %v1439
        %v1445 = vsel %vm473, %v1441, %v1443
        %v1449 = vsel %vm278, %v1434, 0
        %v1452 = vsel %vm278, %v1435, 0
        %1454 = vmatprep.subr.mxu0 0.0
        %1455 = vmatpush1.msra.mxu0 %v1444
        %1456 = vmatprep.subr.mxu0 0.0
        %1457 = vmatpush1.msra.mxu0 %v1445
        %1458 = vmatprep.subr.mxu0 0.0
        %1459 = vmatpush1.msra.mxu0 0.0
        %1460 = vmatprep.subr.mxu0 0.0
        %1461 = vmatpush1.msra.mxu0 0.0
        %1462 = vmatprep.subr.mxu0 0.0
        %1463 = vmatpush1.msra.mxu0 0.0
        %1464 = vmatprep.subr.mxu0 0.0
        %1465 = vmatpush1.msra.mxu0 0.0
        %1466 = vmatprep.subr.mxu0 0.0
        %1467 = vmatpush1.msra.mxu0 0.0
        %1468 = vmatprep.subr.mxu0 0.0
        %1469 = vmatpush1.msra.mxu0 0.0
        %1470 = vmatprep.subr.mxu0 0.0
        %1471 = vmatpush1.msra.mxu0 0.0
        %1472 = vmatprep.subr.mxu0 0.0
        %1473 = vmatpush1.msra.mxu0 0.0
        %1474 = vmatprep.subr.mxu0 0.0
        %1475 = vmatpush1.msra.mxu0 0.0
        %1476 = vmatprep.subr.mxu0 0.0
        %1477 = vmatpush1.msra.mxu0 0.0
        %1478 = vmatprep.subr.mxu0 0.0
        %1479 = vmatpush1.msra.mxu0 0.0
        %1480 = vmatprep.subr.mxu0 0.0
        %1481 = vmatpush1.msra.mxu0 0.0
        %1482 = vmatprep.subr.mxu0 0.0
        %1483 = vmatpush1.msra.mxu0 0.0
        %1484 = vmatprep.subr.mxu0 0.0
        %1485 = vmatpush1.msra.mxu0 0.0
        %1486 = vmatprep.subr.mxu0 0.0
        %1487 = vmatpush1.msra.mxu0 0.0
        %1488 = vmatprep.subr.mxu0 0.0
        %1489 = vmatpush1.msra.mxu0 0.0
        %1490 = vmatprep.subr.mxu0 0.0
        %1491 = vmatpush1.msra.mxu0 0.0
        %1492 = vmatprep.subr.mxu0 0.0
        %1493 = vmatpush1.msra.mxu0 0.0
        %1494 = vmatprep.subr.mxu0 0.0
        %1495 = vmatpush1.msra.mxu0 0.0
        %1496 = vmatprep.subr.mxu0 0.0
        %1497 = vmatpush1.msra.mxu0 0.0
        %1498 = vmatprep.subr.mxu0 0.0
        %1499 = vmatpush1.msra.mxu0 0.0
        %1500 = vmatprep.subr.mxu0 0.0
        %1501 = vmatpush1.msra.mxu0 0.0
        %1502 = vmatprep.subr.mxu0 0.0
        %1503 = vmatpush1.msra.mxu0 0.0
        %1504 = vmatprep.subr.mxu0 0.0
        %1505 = vmatpush1.msra.mxu0 0.0
        %1506 = vmatprep.subr.mxu0 0.0
        %1507 = vmatpush1.msra.mxu0 0.0
        %1508 = vmatprep.subr.mxu0 0.0
        %1509 = vmatpush1.msra.mxu0 0.0
        %1510 = vmatprep.subr.mxu0 0.0
        %1511 = vmatpush1.msra.mxu0 0.0
        %1512 = vmatprep.subr.mxu0 0.0
        %1513 = vmatpush1.msra.mxu0 0.0
        %1514 = vmatprep.subr.mxu0 0.0
        %1515 = vmatpush1.msra.mxu0 0.0
        %1516 = vmatprep.subr.mxu0 0.0
        %1517 = vmatpush1.msra.mxu0 0.0
        %1518 = vmatprep.mubr.f32.mxu0 0.0
        %1519 = vmatmul.mubr.f32.gmra.mrb[0].mxu0 %v1449
        %v1520 = vpop.f32.mrb[0].mxu0
        %v1521 = vadd.f32 0.0, %v1520
        %v1522 = vpop.f32.mrb[0].mxu0
        %1523 = vmatprep.mubr.f32.mxu0 0.0
        %1524 = vmatmul.mubr.f32.gmra.mrb[0].mxu0 %v1452
        %v1525 = vpop.f32.mrb[0].mxu0
        %v1526 = vadd.f32 0.0, %v1525
        %v1527 = vpop.f32.mrb[0].mxu0
        %1528 = vdwg.mxu0
        %v1529 = vadd.f32 %v1425, %v1521
        %v1530 = vadd.f32 %v1430, %v1526
        %s1531 = scalar_lea.vmem %s3, 48
        %v1532 = vld [vmem:[%s1531] sm:$0xff]
        %v1533 = vld [vmem:[%s1531 + $0x8] sm:$0xff]
        %1534 = vrot.lane.b32.xlu0 %v1246, 122
        %v1535 = vpop.permute.xlu0 %1534
        %1536 = vrot.lane.b32.xlu0 %v1247, 122
        %v1537 = vpop.permute.xlu0 %1536
        %1538 = vrot.lane.b32.xlu0 %v1248, 122
        %v1539 = vpop.permute.xlu0 %1538
        %1540 = vrot.lane.b32.xlu0 %v1249, 122
        %v1541 = vpop.permute.xlu0 %1540
        %v1542 = vsel %vm566, %v1535, %v1537
        %v1543 = vsel %vm566, %v1539, %v1541
        %v1547 = vsel %vm278, %v1532, 0
        %v1550 = vsel %vm278, %v1533, 0
        %1552 = vmatprep.subr.mxu0 0.0
        %1553 = vmatpush1.msra.mxu0 %v1542
        %1554 = vmatprep.subr.mxu0 0.0
        %1555 = vmatpush1.msra.mxu0 %v1543
        %1556 = vmatprep.subr.mxu0 0.0
        %1557 = vmatpush1.msra.mxu0 0.0
        %1558 = vmatprep.subr.mxu0 0.0
        %1559 = vmatpush1.msra.mxu0 0.0
        %1560 = vmatprep.subr.mxu0 0.0
        %1561 = vmatpush1.msra.mxu0 0.0
        %1562 = vmatprep.subr.mxu0 0.0
        %1563 = vmatpush1.msra.mxu0 0.0
        %1564 = vmatprep.subr.mxu0 0.0
        %1565 = vmatpush1.msra.mxu0 0.0
        %1566 = vmatprep.subr.mxu0 0.0
        %1567 = vmatpush1.msra.mxu0 0.0
        %1568 = vmatprep.subr.mxu0 0.0
        %1569 = vmatpush1.msra.mxu0 0.0
        %1570 = vmatprep.subr.mxu0 0.0
        %1571 = vmatpush1.msra.mxu0 0.0
        %1572 = vmatprep.subr.mxu0 0.0
        %1573 = vmatpush1.msra.mxu0 0.0
        %1574 = vmatprep.subr.mxu0 0.0
        %1575 = vmatpush1.msra.mxu0 0.0
        %1576 = vmatprep.subr.mxu0 0.0
        %1577 = vmatpush1.msra.mxu0 0.0
        %1578 = vmatprep.subr.mxu0 0.0
        %1579 = vmatpush1.msra.mxu0 0.0
        %1580 = vmatprep.subr.mxu0 0.0
        %1581 = vmatpush1.msra.mxu0 0.0
        %1582 = vmatprep.subr.mxu0 0.0
        %1583 = vmatpush1.msra.mxu0 0.0
        %1584 = vmatprep.subr.mxu0 0.0
        %1585 = vmatpush1.msra.mxu0 0.0
        %1586 = vmatprep.subr.mxu0 0.0
        %1587 = vmatpush1.msra.mxu0 0.0
        %1588 = vmatprep.subr.mxu0 0.0
        %1589 = vmatpush1.msra.mxu0 0.0
        %1590 = vmatprep.subr.mxu0 0.0
        %1591 = vmatpush1.msra.mxu0 0.0
        %1592 = vmatprep.subr.mxu0 0.0
        %1593 = vmatpush1.msra.mxu0 0.0
        %1594 = vmatprep.subr.mxu0 0.0
        %1595 = vmatpush1.msra.mxu0 0.0
        %1596 = vmatprep.subr.mxu0 0.0
        %1597 = vmatpush1.msra.mxu0 0.0
        %1598 = vmatprep.subr.mxu0 0.0
        %1599 = vmatpush1.msra.mxu0 0.0
        %1600 = vmatprep.subr.mxu0 0.0
        %1601 = vmatpush1.msra.mxu0 0.0
        %1602 = vmatprep.subr.mxu0 0.0
        %1603 = vmatpush1.msra.mxu0 0.0
        %1604 = vmatprep.subr.mxu0 0.0
        %1605 = vmatpush1.msra.mxu0 0.0
        %1606 = vmatprep.subr.mxu0 0.0
        %1607 = vmatpush1.msra.mxu0 0.0
        %1608 = vmatprep.subr.mxu0 0.0
        %1609 = vmatpush1.msra.mxu0 0.0
        %1610 = vmatprep.subr.mxu0 0.0
        %1611 = vmatpush1.msra.mxu0 0.0
        %1612 = vmatprep.subr.mxu0 0.0
        %1613 = vmatpush1.msra.mxu0 0.0
        %1614 = vmatprep.subr.mxu0 0.0
        %1615 = vmatpush1.msra.mxu0 0.0
        %1616 = vmatprep.mubr.f32.mxu0 0.0
        %1617 = vmatmul.mubr.f32.gmra.mrb[0].mxu0 %v1547
        %v1618 = vpop.f32.mrb[0].mxu0
        %v1619 = vadd.f32 0.0, %v1618
        %v1620 = vpop.f32.mrb[0].mxu0
        %1621 = vmatprep.mubr.f32.mxu0 0.0
        %1622 = vmatmul.mubr.f32.gmra.mrb[0].mxu0 %v1550
        %v1623 = vpop.f32.mrb[0].mxu0
        %v1624 = vadd.f32 0.0, %v1623
        %v1625 = vpop.f32.mrb[0].mxu0
        %1626 = vdwg.mxu0
        %v1627 = vadd.f32 %v1529, %v1619
        %v1628 = vadd.f32 %v1530, %v1624
        %s1629 = scalar_lea.vmem %s3, 64
        %v1630 = vld [vmem:[%s1629] sm:$0xff]
        %v1631 = vld [vmem:[%s1629 + $0x8] sm:$0xff]
        %1632 = vrot.lane.b32.xlu0 %v1246, 120
        %v1633 = vpop.permute.xlu0 %1632
        %1634 = vrot.lane.b32.xlu0 %v1247, 120
        %v1635 = vpop.permute.xlu0 %1634
        %1636 = vrot.lane.b32.xlu0 %v1248, 120
        %v1637 = vpop.permute.xlu0 %1636
        %1638 = vrot.lane.b32.xlu0 %v1249, 120
        %v1639 = vpop.permute.xlu0 %1638
        %v1640 = vsel %vm659, %v1633, %v1635
        %v1641 = vsel %vm659, %v1637, %v1639
        %v1645 = vsel %vm278, %v1630, 0
        %v1648 = vsel %vm278, %v1631, 0
        %1650 = vmatprep.subr.mxu0 0.0
        %1651 = vmatpush1.msra.mxu0 %v1640
        %1652 = vmatprep.subr.mxu0 0.0
        %1653 = vmatpush1.msra.mxu0 %v1641
        %1654 = vmatprep.subr.mxu0 0.0
        %1655 = vmatpush1.msra.mxu0 0.0
        %1656 = vmatprep.subr.mxu0 0.0
        %1657 = vmatpush1.msra.mxu0 0.0
        %1658 = vmatprep.subr.mxu0 0.0
        %1659 = vmatpush1.msra.mxu0 0.0
        %1660 = vmatprep.subr.mxu0 0.0
        %1661 = vmatpush1.msra.mxu0 0.0
        %1662 = vmatprep.subr.mxu0 0.0
        %1663 = vmatpush1.msra.mxu0 0.0
        %1664 = vmatprep.subr.mxu0 0.0
        %1665 = vmatpush1.msra.mxu0 0.0
        %1666 = vmatprep.subr.mxu0 0.0
        %1667 = vmatpush1.msra.mxu0 0.0
        %1668 = vmatprep.subr.mxu0 0.0
        %1669 = vmatpush1.msra.mxu0 0.0
        %1670 = vmatprep.subr.mxu0 0.0
        %1671 = vmatpush1.msra.mxu0 0.0
        %1672 = vmatprep.subr.mxu0 0.0
        %1673 = vmatpush1.msra.mxu0 0.0
        %1674 = vmatprep.subr.mxu0 0.0
        %1675 = vmatpush1.msra.mxu0 0.0
        %1676 = vmatprep.subr.mxu0 0.0
        %1677 = vmatpush1.msra.mxu0 0.0
        %1678 = vmatprep.subr.mxu0 0.0
        %1679 = vmatpush1.msra.mxu0 0.0
        %1680 = vmatprep.subr.mxu0 0.0
        %1681 = vmatpush1.msra.mxu0 0.0
        %1682 = vmatprep.subr.mxu0 0.0
        %1683 = vmatpush1.msra.mxu0 0.0
        %1684 = vmatprep.subr.mxu0 0.0
        %1685 = vmatpush1.msra.mxu0 0.0
        %1686 = vmatprep.subr.mxu0 0.0
        %1687 = vmatpush1.msra.mxu0 0.0
        %1688 = vmatprep.subr.mxu0 0.0
        %1689 = vmatpush1.msra.mxu0 0.0
        %1690 = vmatprep.subr.mxu0 0.0
        %1691 = vmatpush1.msra.mxu0 0.0
        %1692 = vmatprep.subr.mxu0 0.0
        %1693 = vmatpush1.msra.mxu0 0.0
        %1694 = vmatprep.subr.mxu0 0.0
        %1695 = vmatpush1.msra.mxu0 0.0
        %1696 = vmatprep.subr.mxu0 0.0
        %1697 = vmatpush1.msra.mxu0 0.0
        %1698 = vmatprep.subr.mxu0 0.0
        %1699 = vmatpush1.msra.mxu0 0.0
        %1700 = vmatprep.subr.mxu0 0.0
        %1701 = vmatpush1.msra.mxu0 0.0
        %1702 = vmatprep.subr.mxu0 0.0
        %1703 = vmatpush1.msra.mxu0 0.0
        %1704 = vmatprep.subr.mxu0 0.0
        %1705 = vmatpush1.msra.mxu0 0.0
        %1706 = vmatprep.subr.mxu0 0.0
        %1707 = vmatpush1.msra.mxu0 0.0
        %1708 = vmatprep.subr.mxu0 0.0
        %1709 = vmatpush1.msra.mxu0 0.0
        %1710 = vmatprep.subr.mxu0 0.0
        %1711 = vmatpush1.msra.mxu0 0.0
        %1712 = vmatprep.subr.mxu0 0.0
        %1713 = vmatpush1.msra.mxu0 0.0
        %1714 = vmatprep.mubr.f32.mxu0 0.0
        %1715 = vmatmul.mubr.f32.gmra.mrb[0].mxu0 %v1645
        %v1716 = vpop.f32.mrb[0].mxu0
        %v1717 = vadd.f32 0.0, %v1716
        %v1718 = vpop.f32.mrb[0].mxu0
        %1719 = vmatprep.mubr.f32.mxu0 0.0
        %1720 = vmatmul.mubr.f32.gmra.mrb[0].mxu0 %v1648
        %v1721 = vpop.f32.mrb[0].mxu0
        %v1722 = vadd.f32 0.0, %v1721
        %v1723 = vpop.f32.mrb[0].mxu0
        %1724 = vdwg.mxu0
        %v1725 = vadd.f32 %v1627, %v1717
        %v1726 = vadd.f32 %v1628, %v1722
        %s1727 = scalar_lea.vmem %s3, 80
        %v1728 = vld [vmem:[%s1727] sm:$0xff]
        %v1729 = vld [vmem:[%s1727 + $0x8] sm:$0xff]
        %1730 = vrot.lane.b32.xlu0 %v1246, 118
        %v1731 = vpop.permute.xlu0 %1730
        %1732 = vrot.lane.b32.xlu0 %v1247, 118
        %v1733 = vpop.permute.xlu0 %1732
        %1734 = vrot.lane.b32.xlu0 %v1248, 118
        %v1735 = vpop.permute.xlu0 %1734
        %1736 = vrot.lane.b32.xlu0 %v1249, 118
        %v1737 = vpop.permute.xlu0 %1736
        %v1738 = vsel %vm752, %v1731, %v1733
        %v1739 = vsel %vm752, %v1735, %v1737
        %v1743 = vsel %vm278, %v1728, 0
        %v1746 = vsel %vm278, %v1729, 0
        %1748 = vmatprep.subr.mxu0 0.0
        %1749 = vmatpush1.msra.mxu0 %v1738
        %1750 = vmatprep.subr.mxu0 0.0
        %1751 = vmatpush1.msra.mxu0 %v1739
        %1752 = vmatprep.subr.mxu0 0.0
        %1753 = vmatpush1.msra.mxu0 0.0
        %1754 = vmatprep.subr.mxu0 0.0
        %1755 = vmatpush1.msra.mxu0 0.0
        %1756 = vmatprep.subr.mxu0 0.0
        %1757 = vmatpush1.msra.mxu0 0.0
        %1758 = vmatprep.subr.mxu0 0.0
        %1759 = vmatpush1.msra.mxu0 0.0
        %1760 = vmatprep.subr.mxu0 0.0
        %1761 = vmatpush1.msra.mxu0 0.0
        %1762 = vmatprep.subr.mxu0 0.0
        %1763 = vmatpush1.msra.mxu0 0.0
        %1764 = vmatprep.subr.mxu0 0.0
        %1765 = vmatpush1.msra.mxu0 0.0
        %1766 = vmatprep.subr.mxu0 0.0
        %1767 = vmatpush1.msra.mxu0 0.0
        %1768 = vmatprep.subr.mxu0 0.0
        %1769 = vmatpush1.msra.mxu0 0.0
        %1770 = vmatprep.subr.mxu0 0.0
        %1771 = vmatpush1.msra.mxu0 0.0
        %1772 = vmatprep.subr.mxu0 0.0
        %1773 = vmatpush1.msra.mxu0 0.0
        %1774 = vmatprep.subr.mxu0 0.0
        %1775 = vmatpush1.msra.mxu0 0.0
        %1776 = vmatprep.subr.mxu0 0.0
        %1777 = vmatpush1.msra.mxu0 0.0
        %1778 = vmatprep.subr.mxu0 0.0
        %1779 = vmatpush1.msra.mxu0 0.0
        %1780 = vmatprep.subr.mxu0 0.0
        %1781 = vmatpush1.msra.mxu0 0.0
        %1782 = vmatprep.subr.mxu0 0.0
        %1783 = vmatpush1.msra.mxu0 0.0
        %1784 = vmatprep.subr.mxu0 0.0
        %1785 = vmatpush1.msra.mxu0 0.0
        %1786 = vmatprep.subr.mxu0 0.0
        %1787 = vmatpush1.msra.mxu0 0.0
        %1788 = vmatprep.subr.mxu0 0.0
        %1789 = vmatpush1.msra.mxu0 0.0
        %1790 = vmatprep.subr.mxu0 0.0
        %1791 = vmatpush1.msra.mxu0 0.0
        %1792 = vmatprep.subr.mxu0 0.0
        %1793 = vmatpush1.msra.mxu0 0.0
        %1794 = vmatprep.subr.mxu0 0.0
        %1795 = vmatpush1.msra.mxu0 0.0
        %1796 = vmatprep.subr.mxu0 0.0
        %1797 = vmatpush1.msra.mxu0 0.0
        %1798 = vmatprep.subr.mxu0 0.0
        %1799 = vmatpush1.msra.mxu0 0.0
        %1800 = vmatprep.subr.mxu0 0.0
        %1801 = vmatpush1.msra.mxu0 0.0
        %1802 = vmatprep.subr.mxu0 0.0
        %1803 = vmatpush1.msra.mxu0 0.0
        %1804 = vmatprep.subr.mxu0 0.0
        %1805 = vmatpush1.msra.mxu0 0.0
        %1806 = vmatprep.subr.mxu0 0.0
        %1807 = vmatpush1.msra.mxu0 0.0
        %1808 = vmatprep.subr.mxu0 0.0
        %1809 = vmatpush1.msra.mxu0 0.0
        %1810 = vmatprep.subr.mxu0 0.0
        %1811 = vmatpush1.msra.mxu0 0.0
        %1812 = vmatprep.mubr.f32.mxu0 0.0
        %1813 = vmatmul.mubr.f32.gmra.mrb[0].mxu0 %v1743
        %v1814 = vpop.f32.mrb[0].mxu0
        %v1815 = vadd.f32 0.0, %v1814
        %v1816 = vpop.f32.mrb[0].mxu0
        %1817 = vmatprep.mubr.f32.mxu0 0.0
        %1818 = vmatmul.mubr.f32.gmra.mrb[0].mxu0 %v1746
        %v1819 = vpop.f32.mrb[0].mxu0
        %v1820 = vadd.f32 0.0, %v1819
        %v1821 = vpop.f32.mrb[0].mxu0
        %1822 = vdwg.mxu0
        %v1823 = vadd.f32 %v1725, %v1815
        %v1824 = vadd.f32 %v1726, %v1820
        %s1825 = scalar_lea.vmem %s3, 96
        %v1826 = vld [vmem:[%s1825] sm:$0xff]
        %v1827 = vld [vmem:[%s1825 + $0x8] sm:$0xff]
        %1828 = vrot.lane.b32.xlu0 %v1246, 116
        %v1829 = vpop.permute.xlu0 %1828
        %1830 = vrot.lane.b32.xlu0 %v1247, 116
        %v1831 = vpop.permute.xlu0 %1830
        %1832 = vrot.lane.b32.xlu0 %v1248, 116
        %v1833 = vpop.permute.xlu0 %1832
        %1834 = vrot.lane.b32.xlu0 %v1249, 116
        %v1835 = vpop.permute.xlu0 %1834
        %v1836 = vsel %vm845, %v1829, %v1831
        %v1837 = vsel %vm845, %v1833, %v1835
        %v1841 = vsel %vm278, %v1826, 0
        %v1844 = vsel %vm278, %v1827, 0
        %1846 = vmatprep.subr.mxu0 0.0
        %1847 = vmatpush1.msra.mxu0 %v1836
        %1848 = vmatprep.subr.mxu0 0.0
        %1849 = vmatpush1.msra.mxu0 %v1837
        %1850 = vmatprep.subr.mxu0 0.0
        %1851 = vmatpush1.msra.mxu0 0.0
        %1852 = vmatprep.subr.mxu0 0.0
        %1853 = vmatpush1.msra.mxu0 0.0
        %1854 = vmatprep.subr.mxu0 0.0
        %1855 = vmatpush1.msra.mxu0 0.0
        %1856 = vmatprep.subr.mxu0 0.0
        %1857 = vmatpush1.msra.mxu0 0.0
        %1858 = vmatprep.subr.mxu0 0.0
        %1859 = vmatpush1.msra.mxu0 0.0
        %1860 = vmatprep.subr.mxu0 0.0
        %1861 = vmatpush1.msra.mxu0 0.0
        %1862 = vmatprep.subr.mxu0 0.0
        %1863 = vmatpush1.msra.mxu0 0.0
        %1864 = vmatprep.subr.mxu0 0.0
        %1865 = vmatpush1.msra.mxu0 0.0
        %1866 = vmatprep.subr.mxu0 0.0
        %1867 = vmatpush1.msra.mxu0 0.0
        %1868 = vmatprep.subr.mxu0 0.0
        %1869 = vmatpush1.msra.mxu0 0.0
        %1870 = vmatprep.subr.mxu0 0.0
        %1871 = vmatpush1.msra.mxu0 0.0
        %1872 = vmatprep.subr.mxu0 0.0
        %1873 = vmatpush1.msra.mxu0 0.0
        %1874 = vmatprep.subr.mxu0 0.0
        %1875 = vmatpush1.msra.mxu0 0.0
        %1876 = vmatprep.subr.mxu0 0.0
        %1877 = vmatpush1.msra.mxu0 0.0
        %1878 = vmatprep.subr.mxu0 0.0
        %1879 = vmatpush1.msra.mxu0 0.0
        %1880 = vmatprep.subr.mxu0 0.0
        %1881 = vmatpush1.msra.mxu0 0.0
        %1882 = vmatprep.subr.mxu0 0.0
        %1883 = vmatpush1.msra.mxu0 0.0
        %1884 = vmatprep.subr.mxu0 0.0
        %1885 = vmatpush1.msra.mxu0 0.0
        %1886 = vmatprep.subr.mxu0 0.0
        %1887 = vmatpush1.msra.mxu0 0.0
        %1888 = vmatprep.subr.mxu0 0.0
        %1889 = vmatpush1.msra.mxu0 0.0
        %1890 = vmatprep.subr.mxu0 0.0
        %1891 = vmatpush1.msra.mxu0 0.0
        %1892 = vmatprep.subr.mxu0 0.0
        %1893 = vmatpush1.msra.mxu0 0.0
        %1894 = vmatprep.subr.mxu0 0.0
        %1895 = vmatpush1.msra.mxu0 0.0
        %1896 = vmatprep.subr.mxu0 0.0
        %1897 = vmatpush1.msra.mxu0 0.0
        %1898 = vmatprep.subr.mxu0 0.0
        %1899 = vmatpush1.msra.mxu0 0.0
        %1900 = vmatprep.subr.mxu0 0.0
        %1901 = vmatpush1.msra.mxu0 0.0
        %1902 = vmatprep.subr.mxu0 0.0
        %1903 = vmatpush1.msra.mxu0 0.0
        %1904 = vmatprep.subr.mxu0 0.0
        %1905 = vmatpush1.msra.mxu0 0.0
        %1906 = vmatprep.subr.mxu0 0.0
        %1907 = vmatpush1.msra.mxu0 0.0
        %1908 = vmatprep.subr.mxu0 0.0
        %1909 = vmatpush1.msra.mxu0 0.0
        %1910 = vmatprep.mubr.f32.mxu0 0.0
        %1911 = vmatmul.mubr.f32.gmra.mrb[0].mxu0 %v1841
        %v1912 = vpop.f32.mrb[0].mxu0
        %v1913 = vadd.f32 0.0, %v1912
        %v1914 = vpop.f32.mrb[0].mxu0
        %1915 = vmatprep.mubr.f32.mxu0 0.0
        %1916 = vmatmul.mubr.f32.gmra.mrb[0].mxu0 %v1844
        %v1917 = vpop.f32.mrb[0].mxu0
        %v1918 = vadd.f32 0.0, %v1917
        %v1919 = vpop.f32.mrb[0].mxu0
        %1920 = vdwg.mxu0
        %v1921 = vadd.f32 %v1823, %v1913
        %v1922 = vadd.f32 %v1824, %v1918
        %s1923 = scalar_lea.vmem %s3, 112
        %v1924 = vld [vmem:[%s1923] sm:$0xff]
        %v1925 = vld [vmem:[%s1923 + $0x8] sm:$0xff]
        %1926 = vrot.lane.b32.xlu0 %v1246, 114
        %v1927 = vpop.permute.xlu0 %1926
        %1928 = vrot.lane.b32.xlu0 %v1247, 114
        %v1929 = vpop.permute.xlu0 %1928
        %1930 = vrot.lane.b32.xlu0 %v1248, 114
        %v1931 = vpop.permute.xlu0 %1930
        %1932 = vrot.lane.b32.xlu0 %v1249, 114
        %v1933 = vpop.permute.xlu0 %1932
        %v1934 = vsel %vm938, %v1927, %v1929
        %v1935 = vsel %vm938, %v1931, %v1933
        %v1939 = vsel %vm278, %v1924, 0
        %v1942 = vsel %vm278, %v1925, 0
        %1944 = vmatprep.subr.mxu0 0.0
        %1945 = vmatpush1.msra.mxu0 %v1934
        %1946 = vmatprep.subr.mxu0 0.0
        %1947 = vmatpush1.msra.mxu0 %v1935
        %1948 = vmatprep.subr.mxu0 0.0
        %1949 = vmatpush1.msra.mxu0 0.0
        %1950 = vmatprep.subr.mxu0 0.0
        %1951 = vmatpush1.msra.mxu0 0.0
        %1952 = vmatprep.subr.mxu0 0.0
        %1953 = vmatpush1.msra.mxu0 0.0
        %1954 = vmatprep.subr.mxu0 0.0
        %1955 = vmatpush1.msra.mxu0 0.0
        %1956 = vmatprep.subr.mxu0 0.0
        %1957 = vmatpush1.msra.mxu0 0.0
        %1958 = vmatprep.subr.mxu0 0.0
        %1959 = vmatpush1.msra.mxu0 0.0
        %1960 = vmatprep.subr.mxu0 0.0
        %1961 = vmatpush1.msra.mxu0 0.0
        %1962 = vmatprep.subr.mxu0 0.0
        %1963 = vmatpush1.msra.mxu0 0.0
        %1964 = vmatprep.subr.mxu0 0.0
        %1965 = vmatpush1.msra.mxu0 0.0
        %1966 = vmatprep.subr.mxu0 0.0
        %1967 = vmatpush1.msra.mxu0 0.0
        %1968 = vmatprep.subr.mxu0 0.0
        %1969 = vmatpush1.msra.mxu0 0.0
        %1970 = vmatprep.subr.mxu0 0.0
        %1971 = vmatpush1.msra.mxu0 0.0
        %1972 = vmatprep.subr.mxu0 0.0
        %1973 = vmatpush1.msra.mxu0 0.0
        %1974 = vmatprep.subr.mxu0 0.0
        %1975 = vmatpush1.msra.mxu0 0.0
        %1976 = vmatprep.subr.mxu0 0.0
        %1977 = vmatpush1.msra.mxu0 0.0
        %1978 = vmatprep.subr.mxu0 0.0
        %1979 = vmatpush1.msra.mxu0 0.0
        %1980 = vmatprep.subr.mxu0 0.0
        %1981 = vmatpush1.msra.mxu0 0.0
        %1982 = vmatprep.subr.mxu0 0.0
        %1983 = vmatpush1.msra.mxu0 0.0
        %1984 = vmatprep.subr.mxu0 0.0
        %1985 = vmatpush1.msra.mxu0 0.0
        %1986 = vmatprep.subr.mxu0 0.0
        %1987 = vmatpush1.msra.mxu0 0.0
        %1988 = vmatprep.subr.mxu0 0.0
        %1989 = vmatpush1.msra.mxu0 0.0
        %1990 = vmatprep.subr.mxu0 0.0
        %1991 = vmatpush1.msra.mxu0 0.0
        %1992 = vmatprep.subr.mxu0 0.0
        %1993 = vmatpush1.msra.mxu0 0.0
        %1994 = vmatprep.subr.mxu0 0.0
        %1995 = vmatpush1.msra.mxu0 0.0
        %1996 = vmatprep.subr.mxu0 0.0
        %1997 = vmatpush1.msra.mxu0 0.0
        %1998 = vmatprep.subr.mxu0 0.0
        %1999 = vmatpush1.msra.mxu0 0.0
        %2000 = vmatprep.subr.mxu0 0.0
        %2001 = vmatpush1.msra.mxu0 0.0
        %2002 = vmatprep.subr.mxu0 0.0
        %2003 = vmatpush1.msra.mxu0 0.0
        %2004 = vmatprep.subr.mxu0 0.0
        %2005 = vmatpush1.msra.mxu0 0.0
        %2006 = vmatprep.subr.mxu0 0.0
        %2007 = vmatpush1.msra.mxu0 0.0
        %2008 = vmatprep.mubr.f32.mxu0 0.0
        %2009 = vmatmul.mubr.f32.gmra.mrb[0].mxu0 %v1939
        %v2010 = vpop.f32.mrb[0].mxu0
        %v2011 = vadd.f32 0.0, %v2010
        %v2012 = vpop.f32.mrb[0].mxu0
        %2013 = vmatprep.mubr.f32.mxu0 0.0
        %2014 = vmatmul.mubr.f32.gmra.mrb[0].mxu0 %v1942
        %v2015 = vpop.f32.mrb[0].mxu0
        %v2016 = vadd.f32 0.0, %v2015
        %v2017 = vpop.f32.mrb[0].mxu0
        %2018 = vdwg.mxu0
        %v2019 = vadd.f32 %v1921, %v2011
        %v2020 = vadd.f32 %v1922, %v2016
        %s2021 = scalar_lea.vmem %s3, 128
        %v2022 = vld [vmem:[%s2021] sm:$0xff]
        %v2023 = vld [vmem:[%s2021 + $0x8] sm:$0xff]
        %2024 = vrot.lane.b32.xlu0 %v1246, 112
        %v2025 = vpop.permute.xlu0 %2024
        %2026 = vrot.lane.b32.xlu0 %v1247, 112
        %v2027 = vpop.permute.xlu0 %2026
        %2028 = vrot.lane.b32.xlu0 %v1248, 112
        %v2029 = vpop.permute.xlu0 %2028
        %2030 = vrot.lane.b32.xlu0 %v1249, 112
        %v2031 = vpop.permute.xlu0 %2030
        %v2032 = vsel %vm1031, %v2025, %v2027
        %v2033 = vsel %vm1031, %v2029, %v2031
        %v2037 = vsel %vm278, %v2022, 0
        %v2040 = vsel %vm278, %v2023, 0
        %2042 = vmatprep.subr.mxu0 0.0
        %2043 = vmatpush1.msra.mxu0 %v2032
        %2044 = vmatprep.subr.mxu0 0.0
        %2045 = vmatpush1.msra.mxu0 %v2033
        %2046 = vmatprep.subr.mxu0 0.0
        %2047 = vmatpush1.msra.mxu0 0.0
        %2048 = vmatprep.subr.mxu0 0.0
        %2049 = vmatpush1.msra.mxu0 0.0
        %2050 = vmatprep.subr.mxu0 0.0
        %2051 = vmatpush1.msra.mxu0 0.0
        %2052 = vmatprep.subr.mxu0 0.0
        %2053 = vmatpush1.msra.mxu0 0.0
        %2054 = vmatprep.subr.mxu0 0.0
        %2055 = vmatpush1.msra.mxu0 0.0
        %2056 = vmatprep.subr.mxu0 0.0
        %2057 = vmatpush1.msra.mxu0 0.0
        %2058 = vmatprep.subr.mxu0 0.0
        %2059 = vmatpush1.msra.mxu0 0.0
        %2060 = vmatprep.subr.mxu0 0.0
        %2061 = vmatpush1.msra.mxu0 0.0
        %2062 = vmatprep.subr.mxu0 0.0
        %2063 = vmatpush1.msra.mxu0 0.0
        %2064 = vmatprep.subr.mxu0 0.0
        %2065 = vmatpush1.msra.mxu0 0.0
        %2066 = vmatprep.subr.mxu0 0.0
        %2067 = vmatpush1.msra.mxu0 0.0
        %2068 = vmatprep.subr.mxu0 0.0
        %2069 = vmatpush1.msra.mxu0 0.0
        %2070 = vmatprep.subr.mxu0 0.0
        %2071 = vmatpush1.msra.mxu0 0.0
        %2072 = vmatprep.subr.mxu0 0.0
        %2073 = vmatpush1.msra.mxu0 0.0
        %2074 = vmatprep.subr.mxu0 0.0
        %2075 = vmatpush1.msra.mxu0 0.0
        %2076 = vmatprep.subr.mxu0 0.0
        %2077 = vmatpush1.msra.mxu0 0.0
        %2078 = vmatprep.subr.mxu0 0.0
        %2079 = vmatpush1.msra.mxu0 0.0
        %2080 = vmatprep.subr.mxu0 0.0
        %2081 = vmatpush1.msra.mxu0 0.0
        %2082 = vmatprep.subr.mxu0 0.0
        %2083 = vmatpush1.msra.mxu0 0.0
        %2084 = vmatprep.subr.mxu0 0.0
        %2085 = vmatpush1.msra.mxu0 0.0
        %2086 = vmatprep.subr.mxu0 0.0
        %2087 = vmatpush1.msra.mxu0 0.0
        %2088 = vmatprep.subr.mxu0 0.0
        %2089 = vmatpush1.msra.mxu0 0.0
        %2090 = vmatprep.subr.mxu0 0.0
        %2091 = vmatpush1.msra.mxu0 0.0
        %2092 = vmatprep.subr.mxu0 0.0
        %2093 = vmatpush1.msra.mxu0 0.0
        %2094 = vmatprep.subr.mxu0 0.0
        %2095 = vmatpush1.msra.mxu0 0.0
        %2096 = vmatprep.subr.mxu0 0.0
        %2097 = vmatpush1.msra.mxu0 0.0
        %2098 = vmatprep.subr.mxu0 0.0
        %2099 = vmatpush1.msra.mxu0 0.0
        %2100 = vmatprep.subr.mxu0 0.0
        %2101 = vmatpush1.msra.mxu0 0.0
        %2102 = vmatprep.subr.mxu0 0.0
        %2103 = vmatpush1.msra.mxu0 0.0
        %2104 = vmatprep.subr.mxu0 0.0
        %2105 = vmatpush1.msra.mxu0 0.0
        %2106 = vmatprep.mubr.f32.mxu0 0.0
        %2107 = vmatmul.mubr.f32.gmra.mrb[0].mxu0 %v2037
        %v2108 = vpop.f32.mrb[0].mxu0
        %v2109 = vadd.f32 0.0, %v2108
        %v2110 = vpop.f32.mrb[0].mxu0
        %2111 = vmatprep.mubr.f32.mxu0 0.0
        %2112 = vmatmul.mubr.f32.gmra.mrb[0].mxu0 %v2040
        %v2113 = vpop.f32.mrb[0].mxu0
        %v2114 = vadd.f32 0.0, %v2113
        %v2115 = vpop.f32.mrb[0].mxu0
        %2116 = vdwg.mxu0
        %v2117 = vadd.f32 %v2019, %v2109
        %v2118 = vadd.f32 %v2020, %v2114
        %2120 = vset.pattern.permute.xlu0 0
        %2121 = vperm.xlu0 %2120, %v1228
        %v2122 = vpop.permute.xlu0 %2121
        %2125 = vset.pattern.permute.xlu0 0
        %2126 = vperm.xlu0 %2125, %v1229
        %v2127 = vpop.permute.xlu0 %2126
        %v2129 = vadd.f32 %v2117, %v2122
        %v2130 = vadd.f32 %v2118, %v2127
        %v2131 = vadd.f32 %v2129, %v1226
        %v2132 = vadd.f32 %v2130, %v1227
        %v2133 = vmax.f32 %v2131, 0.0
        %v2134 = vmax.f32 %v2132, 0.0
        %2135 = vst [vmem:[%s269] sm:$0xff] %v2133
        %2136 = vst [vmem:[%s269 + $0x8] sm:$0xff] %v2134
        %s2137 = sand.u32 %s181, 1
        %s2138 = scalar_lea.sflag [#allocation5], %s2137
        %s2139 = sand.u32 %s181, 1
        %s2140 = smul.addr %s2139, 16
        %s2141 = scalar_lea.vmem [#allocation4], %s2140
        // Predicated region
        $region49: #{tpu_custom_call.1} parent=47 // pred_check
          %p2142 = pneg %p191
        $region50: #{tpu_custom_call.1} parent=47 // pred_check_branch
          %2144 = sbr.rel (%p2142) target = $region52
        $region51: #{tpu_custom_call.1} parent=47 // pred_region
          %s2146 = ssub.s32 256, 256
          %2147 = vsyncadd %s2138, %s2146
          %s2148 = smul.addr %s21, 2
          %s2149 = smul.addr %s2148, 128
          %s2150 = scalar_lea.hbm %s7, %s2149
          %s2151 = sshll.u32 %s2141, 4
          %s2152 = int_to_ptr.vmem [resolvable:$true] %s2151
          %2157 = dma.vmem_to_hbm [thread:$0]  %s2152, 256, %s2150, %s2138, 128, 128, 8
        $region52: #{tpu_custom_call.1} parent=47 // pred_fallthru
          _
      $region48: #{tpu_custom_call.1} parent=5 // pred_fallthru
        _
      %p2158 = scmp.le.s32.totalorder 2, %s16
      // Predicated region
      $region53: #{tpu_custom_call.1} parent=5 // pred_check
        %p2159 = pneg %p2158
      $region54: #{tpu_custom_call.1} parent=5 // pred_check_branch
        %2161 = sbr.rel (%p2159) target = $region56
      $region55: #{tpu_custom_call.1} parent=5 // pred_region
        %s2162 = ssub.s32 %s16, 2
        // Predicated region
        $region57: #{tpu_custom_call.1} parent=55 // pred_check
          %p2163 = pneg %p197
        $region58: #{tpu_custom_call.1} parent=55 // pred_check_branch
          %2165 = sbr.rel (%p2163) target = $region60
        $region59: #{tpu_custom_call.1} parent=55 // pred_region
          %s2166 = sand.u32 %s182, 1
          %s2167 = scalar_lea.sflag [#allocation5], %s2166
          %s2168 = sand.u32 %s182, 1
          %s2169 = smul.addr %s2168, 16
          %s2170 = scalar_lea.vmem [#allocation4], %s2169
          %2171 = dma.done %s2167, 256
        $region60: #{tpu_custom_call.1} parent=55 // pred_fallthru
          _
      $region56: #{tpu_custom_call.1} parent=5 // pred_fallthru
        _
    $region6: #{tpu_custom_call.1} parent=1 // loop_footer
      %s20 = sadd.s32 1, %s16
    $region7: #{tpu_custom_call.1} parent=1 // loop_footer_branch
      %15 = sbr.rel target = $region3
    $region8: #{tpu_custom_call.1} parent=1 // loop_exit
      _
    %2172 = vsyncpa [#allocation5], 1
    %s2173 = scalar_lea.sflag [#allocation5], 1
    %2174 = vsyncpa %s2173, 1

</llo_original>
